<compile_context>
chip_gen: v6e
topology: v6e:2x2x1
jax: 0.10.0
libtpu: 0.0.40
codegen_flags: <defaults>
</compile_context>

<pallas_src>
import math

import jax
import jax.numpy as jnp
from jax.experimental import pallas as pl
from jax.experimental.pallas import tpu as pltpu

# ---- config (synthetic, small; EMBED a multiple of 128 for lane density) ----
BATCH = 2
SEQ = 8
EMBED = 128
NUM_HEADS = 4
HEAD_DIM = EMBED // NUM_HEADS
FF_DIM = 256
LN_EPS = 1e-5


def _layer_norm(z, w, b):
    mu = jnp.mean(z, axis=-1, keepdims=True)
    var = jnp.mean((z - mu) ** 2, axis=-1, keepdims=True)
    return (z - mu) * jax.lax.rsqrt(var + LN_EPS) * w + b


def transformer_block_kernel(
    x_ref,
    ln1w_ref, ln1b_ref,
    wqkv_ref, bqkv_ref, wo_ref, bo_ref,
    ln2w_ref, ln2b_ref,
    w1_ref, b1_ref, w2_ref, b2_ref,
    o_ref,
):
    # One grid step == one batch element: x block is (1, SEQ, EMBED).
    x = x_ref[0].astype(jnp.float32)                             # (S, E)

    # ---- sub-layer 1: x = x + MHA(LN1(x)) ----
    h = _layer_norm(x, ln1w_ref[...], ln1b_ref[...])

    # Fused QKV projection; bf16 operands, f32 accumulation.
    # (1/sqrt(head_dim) already folded into the Q slice of wqkv/bqkv.)
    qkv = jnp.dot(h.astype(jnp.bfloat16), wqkv_ref[...],
                  preferred_element_type=jnp.float32) + bqkv_ref[...]
    q = qkv[:, 0 * EMBED:1 * EMBED]
    k = qkv[:, 1 * EMBED:2 * EMBED]
    v = qkv[:, 2 * EMBED:3 * EMBED]

    # Single relayout per tensor: (S, E) -> (S, H, D) -> (H, S, D).
    qs = jnp.transpose(q.reshape(SEQ, NUM_HEADS, HEAD_DIM), (1, 0, 2))
    ks = jnp.transpose(k.reshape(SEQ, NUM_HEADS, HEAD_DIM), (1, 0, 2))
    vs = jnp.transpose(v.reshape(SEQ, NUM_HEADS, HEAD_DIM), (1, 0, 2))

    # Head-batched attention core (f32; tiny at S=8).
    # NOTE: lane-sparse at this size (S=8 of 128 lanes) — fine here; retile
    # flash-style (kv tiles >=128) if SEQ grows.
    s = jnp.einsum('hqd,hkd->hqk', qs, ks,
                   preferred_element_type=jnp.float32)           # (H, S, S)
    s = s - jnp.max(s, axis=-1, keepdims=True)
    p = jnp.exp(s)
    p = p * pl.reciprocal(jnp.sum(p, axis=-1, keepdims=True), approx=True)
    ctx = jnp.einsum('hqk,hkd->hqd', p, vs,
                     preferred_element_type=jnp.float32)         # (H, S, D)

    # Inverse relayout: (H, S, D) -> (S, H, D) -> (S, E).
    attn = jnp.transpose(ctx, (1, 0, 2)).reshape(SEQ, EMBED)
    attn = jnp.dot(attn.astype(jnp.bfloat16), wo_ref[...],
                   preferred_element_type=jnp.float32) + bo_ref[...]
    x1 = x + attn

    # ---- sub-layer 2: x = x + FFN(LN2(x)) ----
    h2 = _layer_norm(x1, ln2w_ref[...], ln2b_ref[...])
    f = jnp.dot(h2.astype(jnp.bfloat16), w1_ref[...],
                preferred_element_type=jnp.float32) + b1_ref[...]
    f = jax.nn.gelu(f, approximate=True)
    f = jnp.dot(f.astype(jnp.bfloat16), w2_ref[...],
                preferred_element_type=jnp.float32) + b2_ref[...]

    o_ref[0] = (x1 + f).astype(o_ref.dtype)


PARAM_ORDER = ("ln1_w", "ln1_b", "wqkv", "bqkv", "wo", "bo",
               "ln2_w", "ln2_b", "w1", "b1", "w2", "b2")


def transformer_block(x, fused_params):
    B, S, E = x.shape
    M = B * S
    args = [fused_params[name] for name in PARAM_ORDER]

    flops = (2 * M * E * 3 * E                                   # fused QKV proj
             + 2 * 2 * (B * NUM_HEADS) * S * S * HEAD_DIM        # QK^T + PV
             + 2 * M * E * E                                     # output proj
             + 2 * M * E * FF_DIM + 2 * M * FF_DIM * E)          # FFN
    transcendentals = B * NUM_HEADS * S * S + M * FF_DIM + 2 * M
    bytes_accessed = (x.size * x.dtype.itemsize                  # input
                      + M * E * x.dtype.itemsize                 # output
                      + sum(int(a.size) * a.dtype.itemsize for a in args))

    # Weights/biases: full-array blocks with a CONSTANT index_map so they stay
    # VMEM-resident across grid steps (no per-step re-DMA).
    def const_spec(a):
        nd = a.ndim
        return pl.BlockSpec(a.shape, lambda b, _nd=nd: (0,) * _nd)

    in_specs = [pl.BlockSpec((1, S, E), lambda b: (b, 0, 0))] + \
               [const_spec(a) for a in args]
    out_spec = pl.BlockSpec((1, S, E), lambda b: (b, 0, 0))

    # One grid step per batch element; "parallel" shards across TensorCores on
    # v7x (no-op on v5e/v6e which have 1 TC).  For real sizes, tile rows so
    # each step sees >=256 rows and re-derive tile size against per-generation
    # VMEM (64 MiB v7x, 128 MiB v5e/v6e).
    out = pl.pallas_call(
        transformer_block_kernel,
        out_shape=jax.ShapeDtypeStruct((B, S, E), x.dtype),
        grid=(B,),
        in_specs=in_specs,
        out_specs=out_spec,
        compiler_params=pltpu.CompilerParams(
            dimension_semantics=("parallel",),
            vmem_limit_bytes=32 * 1024 * 1024),
        cost_estimate=pl.CostEstimate(flops=flops,
                                      transcendentals=transcendentals,
                                      bytes_accessed=bytes_accessed),
    )(x, *args)
    return out


# ------------------------- parameters & reference -------------------------

def init_params(key):
    """Deterministic synthetic parameters. Linear weights stored as (in, out)."""
    ks = jax.random.split(key, 12)

    def lin(kw, kb, din, dout):
        w = jax.random.normal(kw, (din, dout), jnp.float32) / math.sqrt(din)
        b = 0.02 * jax.random.normal(kb, (1, dout), jnp.float32)
        return w, b

    wq, bq = lin(ks[0], ks[1], EMBED, EMBED)
    wk, bk = lin(ks[2], ks[3], EMBED, EMBED)
    wv, bv = lin(ks[4], ks[5], EMBED, EMBED)
    wo, bo = lin(ks[6], ks[7], EMBED, EMBED)
    w1, b1 = lin(ks[8], ks[9], EMBED, FF_DIM)
    w2, b2 = lin(ks[10], ks[11], FF_DIM, EMBED)
    return dict(
        ln1_w=jnp.ones((1, EMBED), jnp.float32),
        ln1_b=jnp.zeros((1, EMBED), jnp.float32),
        ln2_w=jnp.ones((1, EMBED), jnp.float32),
        ln2_b=jnp.zeros((1, EMBED), jnp.float32),
        wq=wq, bq=bq, wk=wk, bk=bk, wv=wv, bv=bv, wo=wo, bo=bo,
        w1=w1, b1=b1, w2=w2, b2=b2,
    )


def fuse_params(p):
    """Host-side param prep: fold 1/sqrt(head_dim) into Q, fuse QKV, and store
    the big matmul weights in bf16 (halves the dominant weight-DMA traffic;
    MXU is bf16-native on all generations).  Biases / LN params stay f32."""
    scale = 1.0 / math.sqrt(HEAD_DIM)
    wqkv = jnp.concatenate([p["wq"] * scale, p["wk"], p["wv"]], axis=1)
    bqkv = jnp.concatenate([p["bq"] * scale, p["bk"], p["bv"]], axis=1)
    return dict(
        ln1_w=p["ln1_w"], ln1_b=p["ln1_b"],
        wqkv=wqkv.astype(jnp.bfloat16), bqkv=bqkv,
        wo=p["wo"].astype(jnp.bfloat16), bo=p["bo"],
        ln2_w=p["ln2_w"], ln2_b=p["ln2_b"],
        w1=p["w1"].astype(jnp.bfloat16), b1=p["b1"],
        w2=p["w2"].astype(jnp.bfloat16), b2=p["b2"],
    )


def transformer_block_reference(x, p):
    """Pure-JAX f32 reference with the unfused parameters."""
    def ln(z, w, b):
        mu = jnp.mean(z, axis=-1, keepdims=True)
        var = jnp.mean((z - mu) ** 2, axis=-1, keepdims=True)
        return (z - mu) * jax.lax.rsqrt(var + LN_EPS) * w + b

    B, S, E = x.shape
    h = ln(x, p["ln1_w"], p["ln1_b"])
    q = (h @ p["wq"] + p["bq"]).reshape(B, S, NUM_HEADS, HEAD_DIM)
    k = (h @ p["wk"] + p["bk"]).reshape(B, S, NUM_HEADS, HEAD_DIM)
    v = (h @ p["wv"] + p["bv"]).reshape(B, S, NUM_HEADS, HEAD_DIM)
    s = jnp.einsum("bqhd,bkhd->bhqk", q, k) / math.sqrt(HEAD_DIM)
    w = jax.nn.softmax(s, axis=-1)
    ctx = jnp.einsum("bhqk,bkhd->bqhd", w, v).reshape(B, S, E)
    x1 = x + ctx @ p["wo"] + p["bo"]
    h2 = ln(x1, p["ln2_w"], p["ln2_b"])
    f = jax.nn.gelu(h2 @ p["w1"] + p["b1"], approximate=True)
    return x1 + f @ p["w2"] + p["b2"]


if __name__ == "__main__":
    key = jax.random.PRNGKey(0)
    kx, kp = jax.random.split(key)
    x = jax.random.normal(kx, (BATCH, SEQ, EMBED), jnp.float32)
    params = init_params(kp)
    fused = fuse_params(params)

    out = transformer_block(x, fused)
    jax.block_until_ready(out)

    assert out.shape == (BATCH, SEQ, EMBED)
    assert bool(jnp.all(jnp.isfinite(out)))
    ref = transformer_block_reference(x, params)
    # Tolerance accounts for bf16 weight storage + approx reciprocal in softmax.
    assert bool(jnp.allclose(out, ref, rtol=3e-2, atol=3e-2))
    print("KERNEL_OK")
</pallas_src>

<mosaic_0001>
module attributes {stable_mosaic.version = 11 : i64} {
  func.func @transformer_block_kernel(%arg0: i32, %arg1: memref<1x8x128xf32, #tpu.memory_space<vmem>>, %arg2: memref<1x128xf32, #tpu.memory_space<vmem>>, %arg3: memref<1x128xf32, #tpu.memory_space<vmem>>, %arg4: memref<128x384xbf16, #tpu.memory_space<vmem>>, %arg5: memref<1x384xf32, #tpu.memory_space<vmem>>, %arg6: memref<128x128xbf16, #tpu.memory_space<vmem>>, %arg7: memref<1x128xf32, #tpu.memory_space<vmem>>, %arg8: memref<1x128xf32, #tpu.memory_space<vmem>>, %arg9: memref<1x128xf32, #tpu.memory_space<vmem>>, %arg10: memref<128x256xbf16, #tpu.memory_space<vmem>>, %arg11: memref<1x256xf32, #tpu.memory_space<vmem>>, %arg12: memref<256x128xbf16, #tpu.memory_space<vmem>>, %arg13: memref<1x128xf32, #tpu.memory_space<vmem>>, %arg14: memref<1x8x128xf32, #tpu.memory_space<vmem>>) attributes {dimension_semantics = [#tpu.dimension_semantics<parallel>], iteration_bounds = array<i64: 2>, scalar_prefetch = 0 : i64, scratch_operands = 0 : i64, tpu.core_type = #tpu.core_type<tc>, window_params = [{transform_indices = @transform_0, window_bounds = array<i64: 1, 8, 128>}, {pipeline_mode = #tpu.pipeline_mode<synchronous>, transform_indices = @transform_1, window_bounds = array<i64: 1, 128>}, {pipeline_mode = #tpu.pipeline_mode<synchronous>, transform_indices = @transform_2, window_bounds = array<i64: 1, 128>}, {pipeline_mode = #tpu.pipeline_mode<synchronous>, transform_indices = @transform_3, window_bounds = array<i64: 128, 384>}, {pipeline_mode = #tpu.pipeline_mode<synchronous>, transform_indices = @transform_4, window_bounds = array<i64: 1, 384>}, {pipeline_mode = #tpu.pipeline_mode<synchronous>, transform_indices = @transform_5, window_bounds = array<i64: 128, 128>}, {pipeline_mode = #tpu.pipeline_mode<synchronous>, transform_indices = @transform_6, window_bounds = array<i64: 1, 128>}, {pipeline_mode = #tpu.pipeline_mode<synchronous>, transform_indices = @transform_7, window_bounds = array<i64: 1, 128>}, {pipeline_mode = #tpu.pipeline_mode<synchronous>, transform_indices = @transform_8, window_bounds = array<i64: 1, 128>}, {pipeline_mode = #tpu.pipeline_mode<synchronous>, transform_indices = @transform_9, window_bounds = array<i64: 128, 256>}, {pipeline_mode = #tpu.pipeline_mode<synchronous>, transform_indices = @transform_10, window_bounds = array<i64: 1, 256>}, {pipeline_mode = #tpu.pipeline_mode<synchronous>, transform_indices = @transform_11, window_bounds = array<i64: 256, 128>}, {pipeline_mode = #tpu.pipeline_mode<synchronous>, transform_indices = @transform_12, window_bounds = array<i64: 1, 128>}, {transform_indices = @transform_13, window_bounds = array<i64: 1, 8, 128>}]} {
    %c0 = arith.constant 0 : index
    %c0_0 = arith.constant 0 : index
    %c0_1 = arith.constant 0 : index
    %0 = vector.load %arg1[%c0, %c0_0, %c0_1] : memref<1x8x128xf32, #tpu.memory_space<vmem>>, vector<1x8x128xf32>
    %1 = vector.shape_cast %0 : vector<1x8x128xf32> to vector<8x128xf32>
    %c0_2 = arith.constant 0 : index
    %c0_3 = arith.constant 0 : index
    %2 = vector.load %arg2[%c0_2, %c0_3] : memref<1x128xf32, #tpu.memory_space<vmem>>, vector<1x128xf32>
    %c0_4 = arith.constant 0 : index
    %c0_5 = arith.constant 0 : index
    %3 = vector.load %arg3[%c0_4, %c0_5] : memref<1x128xf32, #tpu.memory_space<vmem>>, vector<1x128xf32>
    %cst = arith.constant dense<0.000000e+00> : vector<8xf32>
    %4 = vector.multi_reduction <add>, %1, %cst [1] : vector<8x128xf32> to vector<8xf32>
    %5 = vector.shape_cast %4 : vector<8xf32> to vector<8x1xf32>
    %cst_6 = arith.constant 1.280000e+02 : f32
    %6 = vector.broadcast %cst_6 : f32 to vector<8x1xf32>
    %7 = arith.divf %5, %6 : vector<8x1xf32>
    %8 = vector.broadcast %7 : vector<8x1xf32> to vector<8x128xf32>
    %9 = arith.subf %1, %8 : vector<8x128xf32>
    %10 = arith.mulf %9, %9 : vector<8x128xf32>
    %cst_7 = arith.constant dense<0.000000e+00> : vector<8xf32>
    %11 = vector.multi_reduction <add>, %10, %cst_7 [1] : vector<8x128xf32> to vector<8xf32>
    %12 = vector.shape_cast %11 : vector<8xf32> to vector<8x1xf32>
    %cst_8 = arith.constant 1.280000e+02 : f32
    %13 = vector.broadcast %cst_8 : f32 to vector<8x1xf32>
    %14 = arith.divf %12, %13 : vector<8x1xf32>
    %15 = vector.broadcast %7 : vector<8x1xf32> to vector<8x128xf32>
    %16 = arith.subf %1, %15 : vector<8x128xf32>
    %cst_9 = arith.constant 9.99999974E-6 : f32
    %17 = vector.broadcast %cst_9 : f32 to vector<8x1xf32>
    %18 = arith.addf %14, %17 : vector<8x1xf32>
    %19 = math.rsqrt %18 : vector<8x1xf32>
    %20 = vector.broadcast %19 : vector<8x1xf32> to vector<8x128xf32>
    %21 = arith.mulf %16, %20 : vector<8x128xf32>
    %22 = vector.broadcast %2 : vector<1x128xf32> to vector<8x128xf32>
    %23 = arith.mulf %21, %22 : vector<8x128xf32>
    %24 = vector.broadcast %3 : vector<1x128xf32> to vector<8x128xf32>
    %25 = arith.addf %23, %24 : vector<8x128xf32>
    %26 = arith.truncf %25 : vector<8x128xf32> to vector<8x128xbf16>
    %c0_10 = arith.constant 0 : index
    %c0_11 = arith.constant 0 : index
    %27 = vector.load %arg4[%c0_10, %c0_11] : memref<128x384xbf16, #tpu.memory_space<vmem>>, vector<128x384xbf16>
    %cst_12 = arith.constant dense<0.000000e+00> : vector<8x384xf32>
    %28 = tpu.matmul %26, %27, %cst_12 {dimension_numbers = #tpu.dot_dimension_numbers<[1], [0], [0], [1], [0, 0, 1, 1], [], []>} : vector<8x128xbf16>, vector<128x384xbf16>, vector<8x384xf32> -> vector<8x384xf32>
    %c0_13 = arith.constant 0 : index
    %c0_14 = arith.constant 0 : index
    %29 = vector.load %arg5[%c0_13, %c0_14] : memref<1x384xf32, #tpu.memory_space<vmem>>, vector<1x384xf32>
    %30 = vector.broadcast %29 : vector<1x384xf32> to vector<8x384xf32>
    %31 = arith.addf %28, %30 : vector<8x384xf32>
    %32 = vector.extract_strided_slice %31 {offsets = [0, 0], sizes = [8, 128], strides = [1, 1]} : vector<8x384xf32> to vector<8x128xf32>
    %33 = vector.extract_strided_slice %31 {offsets = [0, 128], sizes = [8, 128], strides = [1, 1]} : vector<8x384xf32> to vector<8x128xf32>
    %34 = vector.extract_strided_slice %31 {offsets = [0, 256], sizes = [8, 128], strides = [1, 1]} : vector<8x384xf32> to vector<8x128xf32>
    %35 = vector.shape_cast %32 : vector<8x128xf32> to vector<8x4x32xf32>
    %36 = tpu.transpose %35, [1, 0, 2] : vector<8x4x32xf32> -> vector<4x8x32xf32>
    %37 = vector.shape_cast %33 : vector<8x128xf32> to vector<8x4x32xf32>
    %38 = tpu.transpose %37, [1, 0, 2] : vector<8x4x32xf32> -> vector<4x8x32xf32>
    %39 = vector.shape_cast %34 : vector<8x128xf32> to vector<8x4x32xf32>
    %40 = tpu.transpose %39, [1, 0, 2] : vector<8x4x32xf32> -> vector<4x8x32xf32>
    "tpu.trace_start"() <{level = 10 : i32, message = "hqd,hkd->hqk"}> : () -> ()
    %cst_15 = arith.constant dense<0.000000e+00> : vector<4x8x8xf32>
    %41 = tpu.matmul %36, %38, %cst_15 {dimension_numbers = #tpu.dot_dimension_numbers<[2], [2], [1], [1], [0, 0, 0, 1, 1, 1], [0], [0]>} : vector<4x8x32xf32>, vector<4x8x32xf32>, vector<4x8x8xf32> -> vector<4x8x8xf32>
    "tpu.trace_stop"() : () -> ()
    %cst_16 = arith.constant dense<0xFF800000> : vector<4x8xf32>
    %42 = vector.multi_reduction <maximumf>, %41, %cst_16 [2] : vector<4x8x8xf32> to vector<4x8xf32>
    %43 = vector.shape_cast %42 : vector<4x8xf32> to vector<4x8x1xf32>
    %44 = vector.broadcast %43 : vector<4x8x1xf32> to vector<4x8x8xf32>
    %45 = arith.subf %41, %44 : vector<4x8x8xf32>
    %46 = math.exp %45 : vector<4x8x8xf32>
    %cst_17 = arith.constant dense<0.000000e+00> : vector<4x8xf32>
    %47 = vector.multi_reduction <add>, %46, %cst_17 [2] : vector<4x8x8xf32> to vector<4x8xf32>
    %48 = vector.shape_cast %47 : vector<4x8xf32> to vector<4x8x1xf32>
    %49 = tpu.reciprocal %48 {approx = true} : vector<4x8x1xf32> -> vector<4x8x1xf32>
    %50 = vector.broadcast %49 : vector<4x8x1xf32> to vector<4x8x8xf32>
    %51 = arith.mulf %46, %50 : vector<4x8x8xf32>
    "tpu.trace_start"() <{level = 10 : i32, message = "hqk,hkd->hqd"}> : () -> ()
    %cst_18 = arith.constant dense<0.000000e+00> : vector<4x8x32xf32>
    %52 = tpu.matmul %51, %40, %cst_18 {dimension_numbers = #tpu.dot_dimension_numbers<[2], [1], [1], [2], [0, 0, 0, 1, 1, 2], [0], [0]>} : vector<4x8x8xf32>, vector<4x8x32xf32>, vector<4x8x32xf32> -> vector<4x8x32xf32>
    "tpu.trace_stop"() : () -> ()
    %53 = tpu.transpose %52, [1, 0, 2] : vector<4x8x32xf32> -> vector<8x4x32xf32>
    %54 = vector.shape_cast %53 : vector<8x4x32xf32> to vector<8x128xf32>
    %55 = arith.truncf %54 : vector<8x128xf32> to vector<8x128xbf16>
    %c0_19 = arith.constant 0 : index
    %c0_20 = arith.constant 0 : index
    %56 = vector.load %arg6[%c0_19, %c0_20] : memref<128x128xbf16, #tpu.memory_space<vmem>>, vector<128x128xbf16>
    %cst_21 = arith.constant dense<0.000000e+00> : vector<8x128xf32>
    %57 = tpu.matmul %55, %56, %cst_21 {dimension_numbers = #tpu.dot_dimension_numbers<[1], [0], [0], [1], [0, 0, 1, 1], [], []>} : vector<8x128xbf16>, vector<128x128xbf16>, vector<8x128xf32> -> vector<8x128xf32>
    %c0_22 = arith.constant 0 : index
    %c0_23 = arith.constant 0 : index
    %58 = vector.load %arg7[%c0_22, %c0_23] : memref<1x128xf32, #tpu.memory_space<vmem>>, vector<1x128xf32>
    %59 = vector.broadcast %58 : vector<1x128xf32> to vector<8x128xf32>
    %60 = arith.addf %57, %59 : vector<8x128xf32>
    %61 = arith.addf %1, %60 : vector<8x128xf32>
    %c0_24 = arith.constant 0 : index
    %c0_25 = arith.constant 0 : index
    %62 = vector.load %arg8[%c0_24, %c0_25] : memref<1x128xf32, #tpu.memory_space<vmem>>, vector<1x128xf32>
    %c0_26 = arith.constant 0 : index
    %c0_27 = arith.constant 0 : index
    %63 = vector.load %arg9[%c0_26, %c0_27] : memref<1x128xf32, #tpu.memory_space<vmem>>, vector<1x128xf32>
    %cst_28 = arith.constant dense<0.000000e+00> : vector<8xf32>
    %64 = vector.multi_reduction <add>, %61, %cst_28 [1] : vector<8x128xf32> to vector<8xf32>
    %65 = vector.shape_cast %64 : vector<8xf32> to vector<8x1xf32>
    %cst_29 = arith.constant 1.280000e+02 : f32
    %66 = vector.broadcast %cst_29 : f32 to vector<8x1xf32>
    %67 = arith.divf %65, %66 : vector<8x1xf32>
    %68 = vector.broadcast %67 : vector<8x1xf32> to vector<8x128xf32>
    %69 = arith.subf %61, %68 : vector<8x128xf32>
    %70 = arith.mulf %69, %69 : vector<8x128xf32>
    %cst_30 = arith.constant dense<0.000000e+00> : vector<8xf32>
    %71 = vector.multi_reduction <add>, %70, %cst_30 [1] : vector<8x128xf32> to vector<8xf32>
    %72 = vector.shape_cast %71 : vector<8xf32> to vector<8x1xf32>
    %cst_31 = arith.constant 1.280000e+02 : f32
    %73 = vector.broadcast %cst_31 : f32 to vector<8x1xf32>
    %74 = arith.divf %72, %73 : vector<8x1xf32>
    %75 = vector.broadcast %67 : vector<8x1xf32> to vector<8x128xf32>
    %76 = arith.subf %61, %75 : vector<8x128xf32>
    %cst_32 = arith.constant 9.99999974E-6 : f32
    %77 = vector.broadcast %cst_32 : f32 to vector<8x1xf32>
    %78 = arith.addf %74, %77 : vector<8x1xf32>
    %79 = math.rsqrt %78 : vector<8x1xf32>
    %80 = vector.broadcast %79 : vector<8x1xf32> to vector<8x128xf32>
    %81 = arith.mulf %76, %80 : vector<8x128xf32>
    %82 = vector.broadcast %62 : vector<1x128xf32> to vector<8x128xf32>
    %83 = arith.mulf %81, %82 : vector<8x128xf32>
    %84 = vector.broadcast %63 : vector<1x128xf32> to vector<8x128xf32>
    %85 = arith.addf %83, %84 : vector<8x128xf32>
    %86 = arith.truncf %85 : vector<8x128xf32> to vector<8x128xbf16>
    %c0_33 = arith.constant 0 : index
    %c0_34 = arith.constant 0 : index
    %87 = vector.load %arg10[%c0_33, %c0_34] : memref<128x256xbf16, #tpu.memory_space<vmem>>, vector<128x256xbf16>
    %cst_35 = arith.constant dense<0.000000e+00> : vector<8x256xf32>
    %88 = tpu.matmul %86, %87, %cst_35 {dimension_numbers = #tpu.dot_dimension_numbers<[1], [0], [0], [1], [0, 0, 1, 1], [], []>} : vector<8x128xbf16>, vector<128x256xbf16>, vector<8x256xf32> -> vector<8x256xf32>
    %c0_36 = arith.constant 0 : index
    %c0_37 = arith.constant 0 : index
    %89 = vector.load %arg11[%c0_36, %c0_37] : memref<1x256xf32, #tpu.memory_space<vmem>>, vector<1x256xf32>
    %90 = vector.broadcast %89 : vector<1x256xf32> to vector<8x256xf32>
    %91 = arith.addf %88, %90 : vector<8x256xf32>
    %92 = arith.mulf %91, %91 : vector<8x256xf32>
    %93 = arith.mulf %91, %92 : vector<8x256xf32>
    %cst_38 = arith.constant 4.471500e-02 : f32
    %94 = vector.broadcast %cst_38 : f32 to vector<8x256xf32>
    %95 = arith.mulf %94, %93 : vector<8x256xf32>
    %96 = arith.addf %91, %95 : vector<8x256xf32>
    %cst_39 = arith.constant 0.797884583 : f32
    %97 = vector.broadcast %cst_39 : f32 to vector<8x256xf32>
    %98 = arith.mulf %97, %96 : vector<8x256xf32>
    %99 = math.tanh %98 : vector<8x256xf32>
    %cst_40 = arith.constant 1.000000e+00 : f32
    %100 = vector.broadcast %cst_40 : f32 to vector<8x256xf32>
    %101 = arith.addf %100, %99 : vector<8x256xf32>
    %cst_41 = arith.constant 5.000000e-01 : f32
    %102 = vector.broadcast %cst_41 : f32 to vector<8x256xf32>
    %103 = arith.mulf %102, %101 : vector<8x256xf32>
    %104 = arith.mulf %91, %103 : vector<8x256xf32>
    %105 = arith.truncf %104 : vector<8x256xf32> to vector<8x256xbf16>
    %c0_42 = arith.constant 0 : index
    %c0_43 = arith.constant 0 : index
    %106 = vector.load %arg12[%c0_42, %c0_43] : memref<256x128xbf16, #tpu.memory_space<vmem>>, vector<256x128xbf16>
    %cst_44 = arith.constant dense<0.000000e+00> : vector<8x128xf32>
    %107 = tpu.matmul %105, %106, %cst_44 {dimension_numbers = #tpu.dot_dimension_numbers<[1], [0], [0], [1], [0, 0, 1, 1], [], []>} : vector<8x256xbf16>, vector<256x128xbf16>, vector<8x128xf32> -> vector<8x128xf32>
    %c0_45 = arith.constant 0 : index
    %c0_46 = arith.constant 0 : index
    %108 = vector.load %arg13[%c0_45, %c0_46] : memref<1x128xf32, #tpu.memory_space<vmem>>, vector<1x128xf32>
    %109 = vector.broadcast %108 : vector<1x128xf32> to vector<8x128xf32>
    %110 = arith.addf %107, %109 : vector<8x128xf32>
    %111 = arith.addf %61, %110 : vector<8x128xf32>
    %c0_47 = arith.constant 0 : index
    %c0_48 = arith.constant 0 : index
    %c0_49 = arith.constant 0 : index
    %112 = vector.load %arg14[%c0_47, %c0_48, %c0_49] : memref<1x8x128xf32, #tpu.memory_space<vmem>>, vector<1x8x128xf32>
    %113 = vector.shape_cast %112 : vector<1x8x128xf32> to vector<8x128xf32>
    %114 = vector.shape_cast %111 : vector<8x128xf32> to vector<1x8x128xf32>
    tpu.vector_store %arg14[%c0_47, %c0_48, %c0_49], %114 {strides = array<i32>} : memref<1x8x128xf32, #tpu.memory_space<vmem>>, vector<1x8x128xf32>,
    return
  }
  func.func @transform_0(%arg0: i32) -> (i32, i32, i32) {
    %c0_i32 = arith.constant 0 : i32
    %c0_i32_0 = arith.constant 0 : i32
    %c0_i32_1 = arith.constant 0 : i32
    return %arg0, %c0_i32, %c0_i32_0 : i32, i32, i32
  }
  func.func @transform_1(%arg0: i32) -> (i32, i32) {
    %c0_i32 = arith.constant 0 : i32
    %c0_i32_0 = arith.constant 0 : i32
    %c0_i32_1 = arith.constant 0 : i32
    return %c0_i32, %c0_i32_0 : i32, i32
  }
  func.func @transform_2(%arg0: i32) -> (i32, i32) {
    %c0_i32 = arith.constant 0 : i32
    %c0_i32_0 = arith.constant 0 : i32
    %c0_i32_1 = arith.constant 0 : i32
    return %c0_i32, %c0_i32_0 : i32, i32
  }
  func.func @transform_3(%arg0: i32) -> (i32, i32) {
    %c0_i32 = arith.constant 0 : i32
    %c0_i32_0 = arith.constant 0 : i32
    %c0_i32_1 = arith.constant 0 : i32
    return %c0_i32, %c0_i32_0 : i32, i32
  }
  func.func @transform_4(%arg0: i32) -> (i32, i32) {
    %c0_i32 = arith.constant 0 : i32
    %c0_i32_0 = arith.constant 0 : i32
    %c0_i32_1 = arith.constant 0 : i32
    return %c0_i32, %c0_i32_0 : i32, i32
  }
  func.func @transform_5(%arg0: i32) -> (i32, i32) {
    %c0_i32 = arith.constant 0 : i32
    %c0_i32_0 = arith.constant 0 : i32
    %c0_i32_1 = arith.constant 0 : i32
    return %c0_i32, %c0_i32_0 : i32, i32
  }
  func.func @transform_6(%arg0: i32) -> (i32, i32) {
    %c0_i32 = arith.constant 0 : i32
    %c0_i32_0 = arith.constant 0 : i32
    %c0_i32_1 = arith.constant 0 : i32
    return %c0_i32, %c0_i32_0 : i32, i32
  }
  func.func @transform_7(%arg0: i32) -> (i32, i32) {
    %c0_i32 = arith.constant 0 : i32
    %c0_i32_0 = arith.constant 0 : i32
    %c0_i32_1 = arith.constant 0 : i32
    return %c0_i32, %c0_i32_0 : i32, i32
  }
  func.func @transform_8(%arg0: i32) -> (i32, i32) {
    %c0_i32 = arith.constant 0 : i32
    %c0_i32_0 = arith.constant 0 : i32
    %c0_i32_1 = arith.constant 0 : i32
    return %c0_i32, %c0_i32_0 : i32, i32
  }
  func.func @transform_9(%arg0: i32) -> (i32, i32) {
    %c0_i32 = arith.constant 0 : i32
    %c0_i32_0 = arith.constant 0 : i32
    %c0_i32_1 = arith.constant 0 : i32
    return %c0_i32, %c0_i32_0 : i32, i32
  }
  func.func @transform_10(%arg0: i32) -> (i32, i32) {
    %c0_i32 = arith.constant 0 : i32
    %c0_i32_0 = arith.constant 0 : i32
    %c0_i32_1 = arith.constant 0 : i32
    return %c0_i32, %c0_i32_0 : i32, i32
  }
  func.func @transform_11(%arg0: i32) -> (i32, i32) {
    %c0_i32 = arith.constant 0 : i32
    %c0_i32_0 = arith.constant 0 : i32
    %c0_i32_1 = arith.constant 0 : i32
    return %c0_i32, %c0_i32_0 : i32, i32
  }
  func.func @transform_12(%arg0: i32) -> (i32, i32) {
    %c0_i32 = arith.constant 0 : i32
    %c0_i32_0 = arith.constant 0 : i32
    %c0_i32_1 = arith.constant 0 : i32
    return %c0_i32, %c0_i32_0 : i32, i32
  }
  func.func @transform_13(%arg0: i32) -> (i32, i32, i32) {
    %c0_i32 = arith.constant 0 : i32
    %c0_i32_0 = arith.constant 0 : i32
    %c0_i32_1 = arith.constant 0 : i32
    return %arg0, %c0_i32, %c0_i32_0 : i32, i32, i32
  }
}

</mosaic_0001>

<llo_original>
// kernel: tpu_custom_call.1
$region0: #{tpu_custom_call.1}
  #allocation0 [shape = 'u32[]', space=smem, size = 0x4, offset = 0x4, fixed_abs, tag = 'smem constant byte address 0x4 - core index']
  #allocation1 [shape = 'u32[144,128]{1,0:T(1,128)}', space=vmem, size = 0x12000, scoped, tag = 'internal scratch']
  %s0 = inlined_call_operand.hbm [shape: f32[2,8,128], index: 0, kind: input, shape index: {}]
  %s1 = inlined_call_operand.hbm [shape: f32[1,128], index: 1, kind: input, shape index: {}]
  %s2 = inlined_call_operand.hbm [shape: f32[1,128], index: 2, kind: input, shape index: {}]
  %s3 = inlined_call_operand.hbm [shape: bf16[128,384], index: 3, kind: input, shape index: {}]
  %s4 = inlined_call_operand.vmem [shape: f32[1,384], index: 4, kind: input, shape index: {}]
  %s5 = inlined_call_operand.hbm [shape: bf16[128,128], index: 5, kind: input, shape index: {}]
  %s6 = inlined_call_operand.vmem [shape: f32[1,128], index: 6, kind: input, shape index: {}]
  %s7 = inlined_call_operand.vmem [shape: f32[1,128], index: 7, kind: input, shape index: {}]
  %s8 = inlined_call_operand.vmem [shape: f32[1,128], index: 8, kind: input, shape index: {}]
  %s9 = inlined_call_operand.hbm [shape: bf16[128,256], index: 9, kind: input, shape index: {}]
  %s10 = inlined_call_operand.vmem [shape: f32[1,256], index: 10, kind: input, shape index: {}]
  %s11 = inlined_call_operand.hbm [shape: bf16[256,128], index: 11, kind: input, shape index: {}]
  %s12 = inlined_call_operand.vmem [shape: f32[1,128], index: 12, kind: input, shape index: {}]
  %s13 = inlined_call_operand.hbm [shape: f32[2,8,128], index: 13, kind: output, shape index: {}]
  %s14 = sld [smem:[#allocation0]]
  $region113: #{tpu_custom_call.1} parent=0
    _
  %s16 = ssub.s32 1, %s14
  %s17 = scalar_select 0, %s16, %s14
  $region1: #{tpu_custom_call.1} parent=0
    #allocation2 [shape = 'u8[8192]{0}', space=vmem, size = 0x2000, scoped, tag = 'input window, operand 0']
    #allocation3 [shape = 's32[2]{0}', space=sflag, size = 0x8, scoped, tag = 'scoped memory for tpu_custom_call.1']
    #allocation4 [shape = 's32[2]{0}', space=sflag, size = 0x8, scoped, tag = 'scoped memory for tpu_custom_call.1']
    #allocation5 [shape = 'u8[512]{0}', space=vmem, size = 0x400, scoped, tag = 'input window, operand 1, single buffered']
    #allocation6 [shape = 's32[1]{0}', space=sflag, size = 0x4, scoped, tag = 'scoped memory for tpu_custom_call.1']
    #allocation7 [shape = 'u8[512]{0}', space=vmem, size = 0x400, scoped, tag = 'input window, operand 2, single buffered']
    #allocation8 [shape = 'u8[98304]{0}', space=vmem, size = 0x18000, scoped, tag = 'input window, operand 3, single buffered']
    #allocation9 [shape = 's32[1]{0}', space=sflag, size = 0x4, scoped, tag = 'scoped memory for tpu_custom_call.1']
    #allocation10 [shape = 'u8[32768]{0}', space=vmem, size = 0x8000, scoped, tag = 'input window, operand 5, single buffered']
    #allocation11 [shape = 'u8[65536]{0}', space=vmem, size = 0x10000, scoped, tag = 'input window, operand 9, single buffered']
    #allocation12 [shape = 's32[1]{0}', space=sflag, size = 0x4, scoped, tag = 'scoped memory for tpu_custom_call.1']
    #allocation13 [shape = 'u8[65536]{0}', space=vmem, size = 0x10000, scoped, tag = 'input window, operand 11, single buffered']
    #allocation14 [shape = 'u8[8192]{0}', space=vmem, size = 0x2000, scoped, tag = 'output window, operand 0']
    %18 = vsyncpa [#allocation3], 0
    %s19 = scalar_lea.sflag [#allocation3], 1
    %20 = vsyncpa %s19, 0
    %21 = vsyncpa [#allocation6], 0
    %22 = vsyncpa [#allocation9], 0
    %23 = vsyncpa [#allocation12], 0
    %24 = vsyncpa [#allocation4], 0
    %s25 = scalar_lea.sflag [#allocation4], 1
    %26 = vsyncpa %s25, 0
    loop: start=0, step=1, limit=4
    $region2: #{tpu_custom_call.1} parent=1 // loop_pre_header
      _
    $region3: #{tpu_custom_call.1} parent=1 // loop_header
      %s28 = sphi 0, %s32
      %p29 = scmp.ge.s32.totalorder %s28, 4
      %s38 = sphi 0, %s40
      %s41 = sphi 0, %s38
      %s42 = sphi 0, %s41
      %s58 = sphi 0, %s42
      %s62 = sphi 0, %s62
      %s64 = sphi 0, %s62
      %s65 = sphi 0, %s64
      %s79 = sphi 0, %s65
      %s83 = sphi 0, %s83
      %s85 = sphi 0, %s83
      %s86 = sphi 0, %s85
      %s100 = sphi 0, %s86
      %s104 = sphi 0, %s104
      %s106 = sphi 0, %s104
      %s107 = sphi 0, %s106
      %s121 = sphi 0, %s107
      %s125 = sphi 0, %s125
      %s127 = sphi 0, %s125
      %s128 = sphi 0, %s127
      %s142 = sphi 0, %s128
      %s146 = sphi 0, %s146
      %s148 = sphi 0, %s146
      %s149 = sphi 0, %s148
      %s163 = sphi 0, %s149
      %s167 = sphi 0, %s167
      %s169 = sphi 0, %s167
      %s170 = sphi 0, %s169
      %s184 = sphi 0, %s170
      %s188 = sphi 0, %s188
      %s190 = sphi 0, %s188
      %s191 = sphi 0, %s190
      %s205 = sphi 0, %s191
      %s209 = sphi 0, %s209
      %s211 = sphi 0, %s209
      %s212 = sphi 0, %s211
      %s226 = sphi 0, %s212
      %s230 = sphi 0, %s230
      %s232 = sphi 0, %s230
      %s233 = sphi 0, %s232
      %s247 = sphi 0, %s233
      %s251 = sphi 0, %s251
      %s253 = sphi 0, %s251
      %s254 = sphi 0, %s253
      %s268 = sphi 0, %s254
      %s272 = sphi 0, %s272
      %s274 = sphi 0, %s272
      %s275 = sphi 0, %s274
      %s289 = sphi 0, %s275
      %s293 = sphi 0, %s293
      %s295 = sphi 0, %s293
      %s296 = sphi 0, %s295
      %s310 = sphi 0, %s296
      %s316 = sphi 0, %s318
      %s319 = sphi 0, %s316
      %s320 = sphi 0, %s319
      %s336 = sphi 0, %s320
    $region4: #{tpu_custom_call.1} parent=1 // loop_header_branch
      %31 = sbr.rel (%p29) target = $region8
    $region5: #{tpu_custom_call.1} parent=1 // loop_body
      %s33 = ssub.s32 %s28, 1
      %s34 = ssub.s32 %s28, 2
      %s35 = sadd.s32 %s28, 1
      %s36 = ssub.s32 %s28, %s35
      %p37 = scmp.eq.s32.totalorder %s36, 0
      %s39 = sadd.s32 %s38, 1
      %s40 = scalar_select %p37, %s38, %s39
      %p43 = pneg %p37
      %p44 = scmp.eq.s32.totalorder %s28, 1
      %p45 = por %p43, %p44
      %p46 = scmp.ne.s32.totalorder %s38, %s41
      %p47 = scmp.eq.s32.totalorder %s28, 0
      %p48 = por %p46, %p47
      %p49 = scmp.ne.s32.totalorder %s38, %s41
      %p50 = scmp.eq.s32.totalorder %s33, 1
      %p51 = por %p49, %p50
      %p52 = scmp.ne.s32.totalorder %s41, %s42
      %p53 = scmp.eq.s32.totalorder %s33, 0
      %p54 = por %p52, %p53
      %p55 = scmp.ne.s32.totalorder %s41, %s42
      %p56 = scmp.eq.s32.totalorder %s34, 1
      %p57 = por %p55, %p56
      %p59 = scmp.ne.s32.totalorder %s42, %s58
      %p60 = scmp.eq.s32.totalorder %s34, 0
      %p61 = por %p59, %p60
      %s63 = sadd.s32 %s62, 1
      %p66 = scmp.eq.s32.totalorder %s28, 1
      %p67 = scmp.ne.s32.totalorder %s62, %s64
      %p68 = scmp.eq.s32.totalorder %s28, 0
      %p69 = por %p67, %p68
      %p70 = scmp.ne.s32.totalorder %s62, %s64
      %p71 = scmp.eq.s32.totalorder %s33, 1
      %p72 = por %p70, %p71
      %p73 = scmp.ne.s32.totalorder %s64, %s65
      %p74 = scmp.eq.s32.totalorder %s33, 0
      %p75 = por %p73, %p74
      %p76 = scmp.ne.s32.totalorder %s64, %s65
      %p77 = scmp.eq.s32.totalorder %s34, 1
      %p78 = por %p76, %p77
      %p80 = scmp.ne.s32.totalorder %s65, %s79
      %p81 = scmp.eq.s32.totalorder %s34, 0
      %p82 = por %p80, %p81
      %s84 = sadd.s32 %s83, 1
      %p87 = scmp.eq.s32.totalorder %s28, 1
      %p88 = scmp.ne.s32.totalorder %s83, %s85
      %p89 = scmp.eq.s32.totalorder %s28, 0
      %p90 = por %p88, %p89
      %p91 = scmp.ne.s32.totalorder %s83, %s85
      %p92 = scmp.eq.s32.totalorder %s33, 1
      %p93 = por %p91, %p92
      %p94 = scmp.ne.s32.totalorder %s85, %s86
      %p95 = scmp.eq.s32.totalorder %s33, 0
      %p96 = por %p94, %p95
      %p97 = scmp.ne.s32.totalorder %s85, %s86
      %p98 = scmp.eq.s32.totalorder %s34, 1
      %p99 = por %p97, %p98
      %p101 = scmp.ne.s32.totalorder %s86, %s100
      %p102 = scmp.eq.s32.totalorder %s34, 0
      %p103 = por %p101, %p102
      %s105 = sadd.s32 %s104, 1
      %p108 = scmp.eq.s32.totalorder %s28, 1
      %p109 = scmp.ne.s32.totalorder %s104, %s106
      %p110 = scmp.eq.s32.totalorder %s28, 0
      %p111 = por %p109, %p110
      %p112 = scmp.ne.s32.totalorder %s104, %s106
      %p113 = scmp.eq.s32.totalorder %s33, 1
      %p114 = por %p112, %p113
      %p115 = scmp.ne.s32.totalorder %s106, %s107
      %p116 = scmp.eq.s32.totalorder %s33, 0
      %p117 = por %p115, %p116
      %p118 = scmp.ne.s32.totalorder %s106, %s107
      %p119 = scmp.eq.s32.totalorder %s34, 1
      %p120 = por %p118, %p119
      %p122 = scmp.ne.s32.totalorder %s107, %s121
      %p123 = scmp.eq.s32.totalorder %s34, 0
      %p124 = por %p122, %p123
      %s126 = sadd.s32 %s125, 1
      %p129 = scmp.eq.s32.totalorder %s28, 1
      %p130 = scmp.ne.s32.totalorder %s125, %s127
      %p131 = scmp.eq.s32.totalorder %s28, 0
      %p132 = por %p130, %p131
      %p133 = scmp.ne.s32.totalorder %s125, %s127
      %p134 = scmp.eq.s32.totalorder %s33, 1
      %p135 = por %p133, %p134
      %p136 = scmp.ne.s32.totalorder %s127, %s128
      %p137 = scmp.eq.s32.totalorder %s33, 0
      %p138 = por %p136, %p137
      %p139 = scmp.ne.s32.totalorder %s127, %s128
      %p140 = scmp.eq.s32.totalorder %s34, 1
      %p141 = por %p139, %p140
      %p143 = scmp.ne.s32.totalorder %s128, %s142
      %p144 = scmp.eq.s32.totalorder %s34, 0
      %p145 = por %p143, %p144
      %s147 = sadd.s32 %s146, 1
      %p150 = scmp.eq.s32.totalorder %s28, 1
      %p151 = scmp.ne.s32.totalorder %s146, %s148
      %p152 = scmp.eq.s32.totalorder %s28, 0
      %p153 = por %p151, %p152
      %p154 = scmp.ne.s32.totalorder %s146, %s148
      %p155 = scmp.eq.s32.totalorder %s33, 1
      %p156 = por %p154, %p155
      %p157 = scmp.ne.s32.totalorder %s148, %s149
      %p158 = scmp.eq.s32.totalorder %s33, 0
      %p159 = por %p157, %p158
      %p160 = scmp.ne.s32.totalorder %s148, %s149
      %p161 = scmp.eq.s32.totalorder %s34, 1
      %p162 = por %p160, %p161
      %p164 = scmp.ne.s32.totalorder %s149, %s163
      %p165 = scmp.eq.s32.totalorder %s34, 0
      %p166 = por %p164, %p165
      %s168 = sadd.s32 %s167, 1
      %p171 = scmp.eq.s32.totalorder %s28, 1
      %p172 = scmp.ne.s32.totalorder %s167, %s169
      %p173 = scmp.eq.s32.totalorder %s28, 0
      %p174 = por %p172, %p173
      %p175 = scmp.ne.s32.totalorder %s167, %s169
      %p176 = scmp.eq.s32.totalorder %s33, 1
      %p177 = por %p175, %p176
      %p178 = scmp.ne.s32.totalorder %s169, %s170
      %p179 = scmp.eq.s32.totalorder %s33, 0
      %p180 = por %p178, %p179
      %p181 = scmp.ne.s32.totalorder %s169, %s170
      %p182 = scmp.eq.s32.totalorder %s34, 1
      %p183 = por %p181, %p182
      %p185 = scmp.ne.s32.totalorder %s170, %s184
      %p186 = scmp.eq.s32.totalorder %s34, 0
      %p187 = por %p185, %p186
      %s189 = sadd.s32 %s188, 1
      %p192 = scmp.eq.s32.totalorder %s28, 1
      %p193 = scmp.ne.s32.totalorder %s188, %s190
      %p194 = scmp.eq.s32.totalorder %s28, 0
      %p195 = por %p193, %p194
      %p196 = scmp.ne.s32.totalorder %s188, %s190
      %p197 = scmp.eq.s32.totalorder %s33, 1
      %p198 = por %p196, %p197
      %p199 = scmp.ne.s32.totalorder %s190, %s191
      %p200 = scmp.eq.s32.totalorder %s33, 0
      %p201 = por %p199, %p200
      %p202 = scmp.ne.s32.totalorder %s190, %s191
      %p203 = scmp.eq.s32.totalorder %s34, 1
      %p204 = por %p202, %p203
      %p206 = scmp.ne.s32.totalorder %s191, %s205
      %p207 = scmp.eq.s32.totalorder %s34, 0
      %p208 = por %p206, %p207
      %s210 = sadd.s32 %s209, 1
      %p213 = scmp.eq.s32.totalorder %s28, 1
      %p214 = scmp.ne.s32.totalorder %s209, %s211
      %p215 = scmp.eq.s32.totalorder %s28, 0
      %p216 = por %p214, %p215
      %p217 = scmp.ne.s32.totalorder %s209, %s211
      %p218 = scmp.eq.s32.totalorder %s33, 1
      %p219 = por %p217, %p218
      %p220 = scmp.ne.s32.totalorder %s211, %s212
      %p221 = scmp.eq.s32.totalorder %s33, 0
      %p222 = por %p220, %p221
      %p223 = scmp.ne.s32.totalorder %s211, %s212
      %p224 = scmp.eq.s32.totalorder %s34, 1
      %p225 = por %p223, %p224
      %p227 = scmp.ne.s32.totalorder %s212, %s226
      %p228 = scmp.eq.s32.totalorder %s34, 0
      %p229 = por %p227, %p228
      %s231 = sadd.s32 %s230, 1
      %p234 = scmp.eq.s32.totalorder %s28, 1
      %p235 = scmp.ne.s32.totalorder %s230, %s232
      %p236 = scmp.eq.s32.totalorder %s28, 0
      %p237 = por %p235, %p236
      %p238 = scmp.ne.s32.totalorder %s230, %s232
      %p239 = scmp.eq.s32.totalorder %s33, 1
      %p240 = por %p238, %p239
      %p241 = scmp.ne.s32.totalorder %s232, %s233
      %p242 = scmp.eq.s32.totalorder %s33, 0
      %p243 = por %p241, %p242
      %p244 = scmp.ne.s32.totalorder %s232, %s233
      %p245 = scmp.eq.s32.totalorder %s34, 1
      %p246 = por %p244, %p245
      %p248 = scmp.ne.s32.totalorder %s233, %s247
      %p249 = scmp.eq.s32.totalorder %s34, 0
      %p250 = por %p248, %p249
      %s252 = sadd.s32 %s251, 1
      %p255 = scmp.eq.s32.totalorder %s28, 1
      %p256 = scmp.ne.s32.totalorder %s251, %s253
      %p257 = scmp.eq.s32.totalorder %s28, 0
      %p258 = por %p256, %p257
      %p259 = scmp.ne.s32.totalorder %s251, %s253
      %p260 = scmp.eq.s32.totalorder %s33, 1
      %p261 = por %p259, %p260
      %p262 = scmp.ne.s32.totalorder %s253, %s254
      %p263 = scmp.eq.s32.totalorder %s33, 0
      %p264 = por %p262, %p263
      %p265 = scmp.ne.s32.totalorder %s253, %s254
      %p266 = scmp.eq.s32.totalorder %s34, 1
      %p267 = por %p265, %p266
      %p269 = scmp.ne.s32.totalorder %s254, %s268
      %p270 = scmp.eq.s32.totalorder %s34, 0
      %p271 = por %p269, %p270
      %s273 = sadd.s32 %s272, 1
      %p276 = scmp.eq.s32.totalorder %s28, 1
      %p277 = scmp.ne.s32.totalorder %s272, %s274
      %p278 = scmp.eq.s32.totalorder %s28, 0
      %p279 = por %p277, %p278
      %p280 = scmp.ne.s32.totalorder %s272, %s274
      %p281 = scmp.eq.s32.totalorder %s33, 1
      %p282 = por %p280, %p281
      %p283 = scmp.ne.s32.totalorder %s274, %s275
      %p284 = scmp.eq.s32.totalorder %s33, 0
      %p285 = por %p283, %p284
      %p286 = scmp.ne.s32.totalorder %s274, %s275
      %p287 = scmp.eq.s32.totalorder %s34, 1
      %p288 = por %p286, %p287
      %p290 = scmp.ne.s32.totalorder %s275, %s289
      %p291 = scmp.eq.s32.totalorder %s34, 0
      %p292 = por %p290, %p291
      %s294 = sadd.s32 %s293, 1
      %p297 = scmp.eq.s32.totalorder %s28, 1
      %p298 = scmp.ne.s32.totalorder %s293, %s295
      %p299 = scmp.eq.s32.totalorder %s28, 0
      %p300 = por %p298, %p299
      %p301 = scmp.ne.s32.totalorder %s293, %s295
      %p302 = scmp.eq.s32.totalorder %s33, 1
      %p303 = por %p301, %p302
      %p304 = scmp.ne.s32.totalorder %s295, %s296
      %p305 = scmp.eq.s32.totalorder %s33, 0
      %p306 = por %p304, %p305
      %p307 = scmp.ne.s32.totalorder %s295, %s296
      %p308 = scmp.eq.s32.totalorder %s34, 1
      %p309 = por %p307, %p308
      %p311 = scmp.ne.s32.totalorder %s296, %s310
      %p312 = scmp.eq.s32.totalorder %s34, 0
      %p313 = por %p311, %p312
      %s314 = ssub.s32 %s28, %s35
      %p315 = scmp.eq.s32.totalorder %s314, 0
      %s317 = sadd.s32 %s316, 1
      %s318 = scalar_select %p315, %s316, %s317
      %p321 = pneg %p315
      %p322 = scmp.eq.s32.totalorder %s28, 1
      %p323 = por %p321, %p322
      %p324 = scmp.ne.s32.totalorder %s316, %s319
      %p325 = scmp.eq.s32.totalorder %s28, 0
      %p326 = por %p324, %p325
      %p327 = scmp.ne.s32.totalorder %s316, %s319
      %p328 = scmp.eq.s32.totalorder %s33, 1
      %p329 = por %p327, %p328
      %p330 = scmp.ne.s32.totalorder %s319, %s320
      %p331 = scmp.eq.s32.totalorder %s33, 0
      %p332 = por %p330, %p331
      %p333 = scmp.ne.s32.totalorder %s319, %s320
      %p334 = scmp.eq.s32.totalorder %s34, 1
      %p335 = por %p333, %p334
      %p337 = scmp.ne.s32.totalorder %s320, %s336
      %p338 = scmp.eq.s32.totalorder %s34, 0
      %p339 = por %p337, %p338
      %p340 = scmp.le.s32.totalorder 1, %s28
      %p341 = scmp.lt.s32.totalorder %s28, 3
      %p342 = pnand %p340, %p341
      %p343 = pneg %p342
      // Predicated region
      $region9: #{tpu_custom_call.1} parent=5 // pred_check
        _
      $region10: #{tpu_custom_call.1} parent=5 // pred_check_branch
        %345 = sbr.rel (%p342) target = $region12
      $region11: #{tpu_custom_call.1} parent=5 // pred_region
        %s346 = ssub.s32 %s28, 1
        // Predicated region
        $region13: #{tpu_custom_call.1} parent=11 // pred_check
          %p347 = pneg %p75
        $region14: #{tpu_custom_call.1} parent=11 // pred_check_branch
          %349 = sbr.rel (%p347) target = $region16
        $region15: #{tpu_custom_call.1} parent=11 // pred_region
          %s351 = ssub.s32 16, 16
          %352 = vsyncadd [#allocation6], %s351
          %s354 = sshll.u32 [#allocation5], 4
          %s355 = int_to_ptr.vmem [resolvable:$true] %s354
          %357 = dma.hbm_to_vmem [thread:$0]  %s1, 16, %s355, [#allocation6]
        $region16: #{tpu_custom_call.1} parent=11 // pred_fallthru
          _
        // Predicated region
        $region17: #{tpu_custom_call.1} parent=11 // pred_check
          %p358 = pneg %p96
        $region18: #{tpu_custom_call.1} parent=11 // pred_check_branch
          %360 = sbr.rel (%p358) target = $region20
        $region19: #{tpu_custom_call.1} parent=11 // pred_region
          %s362 = ssub.s32 16, 16
          %363 = vsyncadd [#allocation6], %s362
          %s365 = sshll.u32 [#allocation7], 4
          %s366 = int_to_ptr.vmem [resolvable:$true] %s365
          %368 = dma.hbm_to_vmem [thread:$0]  %s2, 16, %s366, [#allocation6]
        $region20: #{tpu_custom_call.1} parent=11 // pred_fallthru
          _
        // Predicated region
        $region21: #{tpu_custom_call.1} parent=11 // pred_check
          %p369 = pneg %p117
        $region22: #{tpu_custom_call.1} parent=11 // pred_check_branch
          %371 = sbr.rel (%p369) target = $region24
        $region23: #{tpu_custom_call.1} parent=11 // pred_region
          %s373 = ssub.s32 3072, 3072
          %374 = vsyncadd [#allocation9], %s373
          %s375 = sshll.u32 [#allocation8], 4
          %s376 = int_to_ptr.vmem [resolvable:$true] %s375
          %381 = dma.hbm_to_vmem [thread:$0]  %s3, 3072, %s376, [#allocation9], 192, 192, 12
        $region24: #{tpu_custom_call.1} parent=11 // pred_fallthru
          _
        // Predicated region
        $region25: #{tpu_custom_call.1} parent=11 // pred_check
          %p382 = pneg %p138
        $region26: #{tpu_custom_call.1} parent=11 // pred_check_branch
          %384 = sbr.rel (%p382) target = $region28
        $region27: #{tpu_custom_call.1} parent=11 // pred_region
          _
        $region28: #{tpu_custom_call.1} parent=11 // pred_fallthru
          _
        // Predicated region
        $region29: #{tpu_custom_call.1} parent=11 // pred_check
          %p385 = pneg %p159
        $region30: #{tpu_custom_call.1} parent=11 // pred_check_branch
          %387 = sbr.rel (%p385) target = $region32
        $region31: #{tpu_custom_call.1} parent=11 // pred_region
          %s389 = ssub.s32 1024, 1024
          %390 = vsyncadd [#allocation9], %s389
          %s391 = sshll.u32 [#allocation10], 4
          %s392 = int_to_ptr.vmem [resolvable:$true] %s391
          %397 = dma.hbm_to_vmem [thread:$0]  %s5, 1024, %s392, [#allocation9], 64, 64, 4
        $region32: #{tpu_custom_call.1} parent=11 // pred_fallthru
          _
        // Predicated region
        $region33: #{tpu_custom_call.1} parent=11 // pred_check
          %p398 = pneg %p180
        $region34: #{tpu_custom_call.1} parent=11 // pred_check_branch
          %400 = sbr.rel (%p398) target = $region36
        $region35: #{tpu_custom_call.1} parent=11 // pred_region
          _
        $region36: #{tpu_custom_call.1} parent=11 // pred_fallthru
          _
        // Predicated region
        $region37: #{tpu_custom_call.1} parent=11 // pred_check
          %p401 = pneg %p201
        $region38: #{tpu_custom_call.1} parent=11 // pred_check_branch
          %403 = sbr.rel (%p401) target = $region40
        $region39: #{tpu_custom_call.1} parent=11 // pred_region
          _
        $region40: #{tpu_custom_call.1} parent=11 // pred_fallthru
          _
        // Predicated region
        $region41: #{tpu_custom_call.1} parent=11 // pred_check
          %p404 = pneg %p222
        $region42: #{tpu_custom_call.1} parent=11 // pred_check_branch
          %406 = sbr.rel (%p404) target = $region44
        $region43: #{tpu_custom_call.1} parent=11 // pred_region
          _
        $region44: #{tpu_custom_call.1} parent=11 // pred_fallthru
          _
        // Predicated region
        $region45: #{tpu_custom_call.1} parent=11 // pred_check
          %p407 = pneg %p243
        $region46: #{tpu_custom_call.1} parent=11 // pred_check_branch
          %409 = sbr.rel (%p407) target = $region48
        $region47: #{tpu_custom_call.1} parent=11 // pred_region
          %s411 = ssub.s32 2048, 2048
          %412 = vsyncadd [#allocation12], %s411
          %s413 = sshll.u32 [#allocation11], 4
          %s414 = int_to_ptr.vmem [resolvable:$true] %s413
          %419 = dma.hbm_to_vmem [thread:$0]  %s9, 2048, %s414, [#allocation12], 128, 128, 8
        $region48: #{tpu_custom_call.1} parent=11 // pred_fallthru
          _
        // Predicated region
        $region49: #{tpu_custom_call.1} parent=11 // pred_check
          %p420 = pneg %p264
        $region50: #{tpu_custom_call.1} parent=11 // pred_check_branch
          %422 = sbr.rel (%p420) target = $region52
        $region51: #{tpu_custom_call.1} parent=11 // pred_region
          _
        $region52: #{tpu_custom_call.1} parent=11 // pred_fallthru
          _
        // Predicated region
        $region53: #{tpu_custom_call.1} parent=11 // pred_check
          %p423 = pneg %p285
        $region54: #{tpu_custom_call.1} parent=11 // pred_check_branch
          %425 = sbr.rel (%p423) target = $region56
        $region55: #{tpu_custom_call.1} parent=11 // pred_region
          %s427 = ssub.s32 2048, 2048
          %428 = vsyncadd [#allocation12], %s427
          %s429 = sshll.u32 [#allocation13], 4
          %s430 = int_to_ptr.vmem [resolvable:$true] %s429
          %435 = dma.hbm_to_vmem [thread:$0]  %s11, 2048, %s430, [#allocation12], 64, 64, 4
        $region56: #{tpu_custom_call.1} parent=11 // pred_fallthru
          _
        // Predicated region
        $region57: #{tpu_custom_call.1} parent=11 // pred_check
          %p436 = pneg %p306
        $region58: #{tpu_custom_call.1} parent=11 // pred_check_branch
          %438 = sbr.rel (%p436) target = $region60
        $region59: #{tpu_custom_call.1} parent=11 // pred_region
          _
        $region60: #{tpu_custom_call.1} parent=11 // pred_fallthru
          _
      $region12: #{tpu_custom_call.1} parent=5 // pred_fallthru
        _
      %p439 = scmp.lt.s32.totalorder %s28, 2
      // Predicated region
      $region61: #{tpu_custom_call.1} parent=5 // pred_check
        %p440 = pneg %p439
      $region62: #{tpu_custom_call.1} parent=5 // pred_check_branch
        %442 = sbr.rel (%p440) target = $region64
      $region63: #{tpu_custom_call.1} parent=5 // pred_region
        // Predicated region
        $region65: #{tpu_custom_call.1} parent=63 // pred_check
          %p443 = pneg %p48
        $region66: #{tpu_custom_call.1} parent=63 // pred_check_branch
          %445 = sbr.rel (%p443) target = $region68
        $region67: #{tpu_custom_call.1} parent=63 // pred_region
          %s446 = sand.u32 %s38, 1
          %s447 = scalar_lea.sflag [#allocation3], %s446
          %s448 = sand.u32 %s38, 1
          %s449 = smul.addr %s448, 8
          %s450 = scalar_lea.vmem [#allocation2], %s449
          %s452 = ssub.s32 128, 128
          %453 = vsyncadd %s447, %s452
          %s454 = smul.addr %s28, 128
          %s455 = scalar_lea.hbm %s0, %s454
          %s457 = sshll.u32 %s450, 4
          %s458 = int_to_ptr.vmem [resolvable:$true] %s457
          %460 = dma.hbm_to_vmem [thread:$0]  %s455, 128, %s458, %s447
        $region68: #{tpu_custom_call.1} parent=63 // pred_fallthru
          _
      $region64: #{tpu_custom_call.1} parent=5 // pred_fallthru
        _
      %p461 = scmp.le.s32.totalorder 1, %s28
      %p462 = scmp.lt.s32.totalorder %s28, 3
      %p463 = pnand %p461, %p462
      %p464 = pneg %p463
      // Predicated region
      $region69: #{tpu_custom_call.1} parent=5 // pred_check
        _
      $region70: #{tpu_custom_call.1} parent=5 // pred_check_branch
        %466 = sbr.rel (%p463) target = $region72
      $region71: #{tpu_custom_call.1} parent=5 // pred_region
        %s467 = ssub.s32 %s28, 1
        %s468 = sand.u32 %s41, 1
        %s469 = scalar_lea.sflag [#allocation3], %s468
        %s470 = sand.u32 %s41, 1
        %s471 = smul.addr %s470, 8
        %s472 = scalar_lea.vmem [#allocation2], %s471
        // Predicated region
        $region73: #{tpu_custom_call.1} parent=71 // pred_check
          %p473 = pneg %p54
        $region74: #{tpu_custom_call.1} parent=71 // pred_check_branch
          %475 = sbr.rel (%p473) target = $region76
        $region75: #{tpu_custom_call.1} parent=71 // pred_region
          %476 = dma.done %s469, 128
        $region76: #{tpu_custom_call.1} parent=71 // pred_fallthru
          _
        // Predicated region
        $region77: #{tpu_custom_call.1} parent=71 // pred_check
          %p477 = pneg %p75
        $region78: #{tpu_custom_call.1} parent=71 // pred_check_branch
          %479 = sbr.rel (%p477) target = $region80
        $region79: #{tpu_custom_call.1} parent=71 // pred_region
          %480 = dma.done [#allocation6], 16
        $region80: #{tpu_custom_call.1} parent=71 // pred_fallthru
          _
        // Predicated region
        $region81: #{tpu_custom_call.1} parent=71 // pred_check
          %p481 = pneg %p96
        $region82: #{tpu_custom_call.1} parent=71 // pred_check_branch
          %483 = sbr.rel (%p481) target = $region84
        $region83: #{tpu_custom_call.1} parent=71 // pred_region
          %484 = dma.done [#allocation6], 16
        $region84: #{tpu_custom_call.1} parent=71 // pred_fallthru
          _
        // Predicated region
        $region85: #{tpu_custom_call.1} parent=71 // pred_check
          %p485 = pneg %p117
        $region86: #{tpu_custom_call.1} parent=71 // pred_check_branch
          %487 = sbr.rel (%p485) target = $region88
        $region87: #{tpu_custom_call.1} parent=71 // pred_region
          %488 = dma.done [#allocation9], 3072
        $region88: #{tpu_custom_call.1} parent=71 // pred_fallthru
          _
        // Predicated region
        $region89: #{tpu_custom_call.1} parent=71 // pred_check
          %p489 = pneg %p159
        $region90: #{tpu_custom_call.1} parent=71 // pred_check_branch
          %491 = sbr.rel (%p489) target = $region92
        $region91: #{tpu_custom_call.1} parent=71 // pred_region
          %492 = dma.done [#allocation9], 1024
        $region92: #{tpu_custom_call.1} parent=71 // pred_fallthru
          _
        // Predicated region
        $region93: #{tpu_custom_call.1} parent=71 // pred_check
          %p493 = pneg %p243
        $region94: #{tpu_custom_call.1} parent=71 // pred_check_branch
          %495 = sbr.rel (%p493) target = $region96
        $region95: #{tpu_custom_call.1} parent=71 // pred_region
          %496 = dma.done [#allocation12], 2048
        $region96: #{tpu_custom_call.1} parent=71 // pred_fallthru
          _
        // Predicated region
        $region97: #{tpu_custom_call.1} parent=71 // pred_check
          %p497 = pneg %p285
        $region98: #{tpu_custom_call.1} parent=71 // pred_check_branch
          %499 = sbr.rel (%p497) target = $region100
        $region99: #{tpu_custom_call.1} parent=71 // pred_region
          %500 = dma.done [#allocation12], 2048
        $region100: #{tpu_custom_call.1} parent=71 // pred_fallthru
          _
        %s501 = sand.u32 %s41, 1
        %s502 = scalar_lea.sflag [#allocation3], %s501
        %s503 = sand.u32 %s41, 1
        %s504 = smul.addr %s503, 8
        %s505 = scalar_lea.vmem [#allocation2], %s504
        %p506 = pneg %p54
        %p507 = pneg %p51
        %p508 = pneg %p75
        %p509 = pneg %p72
        %p510 = pneg %p96
        %p511 = pneg %p93
        %p512 = pneg %p117
        %p513 = pneg %p114
        %p514 = pneg %p138
        %p515 = pneg %p135
        %p516 = pneg %p159
        %p517 = pneg %p156
        %p518 = pneg %p180
        %p519 = pneg %p177
        %p520 = pneg %p201
        %p521 = pneg %p198
        %p522 = pneg %p222
        %p523 = pneg %p219
        %p524 = pneg %p243
        %p525 = pneg %p240
        %p526 = pneg %p264
        %p527 = pneg %p261
        %p528 = pneg %p285
        %p529 = pneg %p282
        %p530 = pneg %p306
        %p531 = pneg %p303
        %p532 = pneg %p332
        %p533 = pneg %p329
        %s534 = sand.u32 %s319, 1
        %s535 = scalar_lea.sflag [#allocation4], %s534
        %s536 = sand.u32 %s319, 1
        %s537 = smul.addr %s536, 8
        %s538 = scalar_lea.vmem [#allocation14], %s537
        %v540 = vld [vmem:[%s472] sm:$0xff]
        %v541 = vld [vmem:[#allocation5] sm:$0x1]
        %v542 = vld [vmem:[#allocation7] sm:$0x1]
        %543 = vadd.xlane.f32.xlu0 %v540
        %v544 = vpop.xlane.xlu0 %543
        %v545 = vrcp.pop 128.0
        %v546 = vmul.f32 %v544, %v545
        %v547 = vsub.f32 %v540, %v546
        %v548 = vmul.f32 %v547, %v547
        %549 = vadd.xlane.f32.xlu0 %v548
        %v550 = vpop.xlane.xlu0 %549
        %v551 = vmul.f32 %v550, %v545
        %v552 = vadd.f32 %v551, 1e-05
        %v553 = vrsqrt.pop %v552
        %v554 = vmul.f32 %v547, %v553
        %v556 = vlaneseq
        %v557 = vshrl.u32 %v556, 7
        %v558 = vsub.s32 0, %v557
        %v559 = vrot.slane %v541, %v558
        %v561 = vmul.f32 %v554, %v559
        %v563 = vlaneseq
        %v564 = vshrl.u32 %v563, 7
        %v565 = vsub.s32 0, %v564
        %v566 = vrot.slane %v542, %v565
        %v568 = vadd.f32 %v561, %v566
        %v569 = vpack.c.bf16 %v568, %v568
        %v570 = vld [vmem:[#allocation8] sm:$0xff]
        %v571 = vld [vmem:[#allocation8 + $0x8] sm:$0xf]
        %v572 = vld [vmem:[#allocation8 + $0xc] sm:$0xff]
        %v573 = vld [vmem:[#allocation8 + $0x14] sm:$0xf]
        %v574 = vld [vmem:[#allocation8 + $0x18] sm:$0xff]
        %v575 = vld [vmem:[#allocation8 + $0x20] sm:$0xf]
        %v576 = vld [vmem:[#allocation8 + $0x24] sm:$0xff]
        %v577 = vld [vmem:[#allocation8 + $0x2c] sm:$0xf]
        %v578 = vld [vmem:[#allocation8 + $0x30] sm:$0xff]
        %v579 = vld [vmem:[#allocation8 + $0x38] sm:$0xf]
        %v580 = vld [vmem:[#allocation8 + $0x3c] sm:$0xff]
        %v581 = vld [vmem:[#allocation8 + $0x44] sm:$0xf]
        %v582 = vld [vmem:[#allocation8 + $0x48] sm:$0xff]
        %v583 = vld [vmem:[#allocation8 + $0x50] sm:$0xf]
        %v584 = vld [vmem:[#allocation8 + $0x54] sm:$0xff]
        %v585 = vld [vmem:[#allocation8 + $0x5c] sm:$0xf]
        %v586 = vld [vmem:[#allocation8 + $0x60] sm:$0xff]
        %v587 = vld [vmem:[#allocation8 + $0x68] sm:$0xf]
        %v588 = vld [vmem:[#allocation8 + $0x6c] sm:$0xff]
        %v589 = vld [vmem:[#allocation8 + $0x74] sm:$0xf]
        %v590 = vld [vmem:[#allocation8 + $0x78] sm:$0xff]
        %v591 = vld [vmem:[#allocation8 + $0x80] sm:$0xf]
        %v592 = vld [vmem:[#allocation8 + $0x84] sm:$0xff]
        %v593 = vld [vmem:[#allocation8 + $0x8c] sm:$0xf]
        %v594 = vld [vmem:[#allocation8 + $0x90] sm:$0xff]
        %v595 = vld [vmem:[#allocation8 + $0x98] sm:$0xf]
        %v596 = vld [vmem:[#allocation8 + $0x9c] sm:$0xff]
        %v597 = vld [vmem:[#allocation8 + $0xa4] sm:$0xf]
        %v598 = vld [vmem:[#allocation8 + $0xa8] sm:$0xff]
        %v599 = vld [vmem:[#allocation8 + $0xb0] sm:$0xf]
        %v600 = vld [vmem:[#allocation8 + $0xb4] sm:$0xff]
        %v601 = vld [vmem:[#allocation8 + $0xbc] sm:$0xf]
        %v602 = vld [vmem:[%s4] sm:$0x7]
        %v604 = vlaneseq
        %v605 = vshrl.u32 %v604, 7
        %v606 = vsub.s32 0, %v605
        %v607 = vrot.slane %v602, %v606
        %v608 = vlaneseq
        %v609 = vshrl.u32 %v608, 7
        %v610 = vsub.s32 1, %v609
        %v611 = vrot.slane %v602, %v610
        %v612 = vlaneseq
        %v613 = vshrl.u32 %v612, 7
        %v614 = vsub.s32 2, %v613
        %v615 = vrot.slane %v602, %v614
        %v651 = vunpack.c.l.b16 %v570
        %v652 = vunpack.c.h.b16 %v570
        %v653 = vunpack.c.l.b16 %v571
        %v654 = vunpack.c.l.b16 %v572
        %v655 = vunpack.c.h.b16 %v572
        %v656 = vunpack.c.l.b16 %v573
        %v657 = vunpack.c.l.b16 %v574
        %v658 = vunpack.c.h.b16 %v574
        %v659 = vunpack.c.l.b16 %v575
        %v660 = vunpack.c.l.b16 %v576
        %v661 = vunpack.c.h.b16 %v576
        %v662 = vunpack.c.l.b16 %v577
        %v663 = vunpack.c.l.b16 %v578
        %v664 = vunpack.c.h.b16 %v578
        %v665 = vunpack.c.l.b16 %v579
        %v666 = vunpack.c.l.b16 %v580
        %v667 = vunpack.c.h.b16 %v580
        %v668 = vunpack.c.l.b16 %v581
        %v669 = vunpack.c.l.b16 %v582
        %v670 = vunpack.c.h.b16 %v582
        %v671 = vunpack.c.l.b16 %v583
        %v672 = vunpack.c.l.b16 %v584
        %v673 = vunpack.c.h.b16 %v584
        %v674 = vunpack.c.l.b16 %v585
        %v675 = vunpack.c.l.b16 %v586
        %v676 = vunpack.c.h.b16 %v586
        %v677 = vunpack.c.l.b16 %v587
        %v678 = vunpack.c.l.b16 %v588
        %v679 = vunpack.c.h.b16 %v588
        %v680 = vunpack.c.l.b16 %v589
        %v681 = vunpack.c.l.b16 %v590
        %v682 = vunpack.c.h.b16 %v590
        %v683 = vunpack.c.l.b16 %v591
        %v684 = vunpack.c.l.b16 %v592
        %v685 = vunpack.c.h.b16 %v592
        %v686 = vunpack.c.l.b16 %v593
        %v687 = vunpack.c.l.b16 %v594
        %v688 = vunpack.c.h.b16 %v594
        %v689 = vunpack.c.l.b16 %v595
        %v690 = vunpack.c.l.b16 %v596
        %v691 = vunpack.c.h.b16 %v596
        %v692 = vunpack.c.l.b16 %v597
        %v693 = vunpack.c.l.b16 %v598
        %v694 = vunpack.c.h.b16 %v598
        %v695 = vunpack.c.l.b16 %v599
        %v696 = vunpack.c.l.b16 %v600
        %v697 = vunpack.c.h.b16 %v600
        %v698 = vunpack.c.l.b16 %v601
        %v699 = vpack.c.b16 %v654, %v651
        %v700 = vpack.c.b16 %v655, %v652
        %v701 = vpack.c.b16 %v656, %v653
        %v702 = vpack.c.b16 %v660, %v657
        %v703 = vpack.c.b16 %v661, %v658
        %v704 = vpack.c.b16 %v662, %v659
        %v705 = vpack.c.b16 %v666, %v663
        %v706 = vpack.c.b16 %v667, %v664
        %v707 = vpack.c.b16 %v668, %v665
        %v708 = vpack.c.b16 %v672, %v669
        %v709 = vpack.c.b16 %v673, %v670
        %v710 = vpack.c.b16 %v674, %v671
        %v711 = vpack.c.b16 %v678, %v675
        %v712 = vpack.c.b16 %v679, %v676
        %v713 = vpack.c.b16 %v680, %v677
        %v714 = vpack.c.b16 %v684, %v681
        %v715 = vpack.c.b16 %v685, %v682
        %v716 = vpack.c.b16 %v686, %v683
        %v717 = vpack.c.b16 %v690, %v687
        %v718 = vpack.c.b16 %v691, %v688
        %v719 = vpack.c.b16 %v692, %v689
        %v720 = vpack.c.b16 %v696, %v693
        %v721 = vpack.c.b16 %v697, %v694
        %v722 = vpack.c.b16 %v698, %v695
        %747 = vmatprep.subr.bf16.mxu0 %v721
        %748 = vmatpush1.bf16.msra.mxu0 %v720
        %749 = vmatprep.subr.bf16.mxu0 %v718
        %750 = vmatpush1.bf16.msra.mxu0 %v717
        %751 = vmatprep.subr.bf16.mxu0 %v715
        %752 = vmatpush1.bf16.msra.mxu0 %v714
        %753 = vmatprep.subr.bf16.mxu0 %v712
        %754 = vmatpush1.bf16.msra.mxu0 %v711
        %755 = vmatprep.subr.bf16.mxu0 %v709
        %756 = vmatpush1.bf16.msra.mxu0 %v708
        %757 = vmatprep.subr.bf16.mxu0 %v706
        %758 = vmatpush1.bf16.msra.mxu0 %v705
        %759 = vmatprep.subr.bf16.mxu0 %v703
        %760 = vmatpush1.bf16.msra.mxu0 %v702
        %761 = vmatprep.subr.bf16.mxu0 %v700
        %762 = vmatpush1.bf16.msra.mxu0 %v699
        %763 = vmatprep.subr.bf16.mxu0 0
        %764 = vmatpush2.bf16.msra.mxu0 0
        %765 = vmatprep.subr.bf16.mxu0 0
        %766 = vmatpush2.bf16.msra.mxu0 0
        %767 = vmatprep.subr.bf16.mxu0 0
        %768 = vmatpush2.bf16.msra.mxu0 0
        %769 = vmatprep.subr.bf16.mxu0 0
        %770 = vmatpush2.bf16.msra.mxu0 0
        %771 = vmatprep.subr.bf16.mxu0 0
        %772 = vmatpush2.bf16.msra.mxu0 0
        %773 = vmatprep.subr.bf16.mxu0 0
        %774 = vmatpush2.bf16.msra.mxu0 0
        %775 = vmatprep.subr.bf16.mxu0 0
        %776 = vmatpush2.bf16.msra.mxu0 0
        %777 = vmatprep.subr.bf16.mxu0 0
        %778 = vmatpush2.bf16.msra.mxu0 0
        %779 = vmatprep.mubr.bf16.mxu0 0
        %780 = vmatmul.mubr.bf16.gmra.mxu0 %v569
        %v781 = vpop.f32.mrf.mxu0
        %v782 = vadd.f32 %v607, %v781
        %v783 = vpop.f32.mrf.mxu0
        %v784 = vadd.f32 %v611, %v783
        %v785 = vpop.f32.mrf.mxu0
        %v786 = vpop.f32.mrf.mxu0
        %787 = vdwg.mxu0
        %788 = vmatprep.subr.bf16.mxu0 0
        %789 = vmatpush1.bf16.msra.mxu0 %v722
        %790 = vmatprep.subr.bf16.mxu0 0
        %791 = vmatpush1.bf16.msra.mxu0 %v719
        %792 = vmatprep.subr.bf16.mxu0 0
        %793 = vmatpush1.bf16.msra.mxu0 %v716
        %794 = vmatprep.subr.bf16.mxu0 0
        %795 = vmatpush1.bf16.msra.mxu0 %v713
        %796 = vmatprep.subr.bf16.mxu0 0
        %797 = vmatpush1.bf16.msra.mxu0 %v710
        %798 = vmatprep.subr.bf16.mxu0 0
        %799 = vmatpush1.bf16.msra.mxu0 %v707
        %800 = vmatprep.subr.bf16.mxu0 0
        %801 = vmatpush1.bf16.msra.mxu0 %v704
        %802 = vmatprep.subr.bf16.mxu0 0
        %803 = vmatpush1.bf16.msra.mxu0 %v701
        %804 = vmatprep.subr.bf16.mxu0 0
        %805 = vmatpush2.bf16.msra.mxu0 0
        %806 = vmatprep.subr.bf16.mxu0 0
        %807 = vmatpush2.bf16.msra.mxu0 0
        %808 = vmatprep.subr.bf16.mxu0 0
        %809 = vmatpush2.bf16.msra.mxu0 0
        %810 = vmatprep.subr.bf16.mxu0 0
        %811 = vmatpush2.bf16.msra.mxu0 0
        %812 = vmatprep.subr.bf16.mxu0 0
        %813 = vmatpush2.bf16.msra.mxu0 0
        %814 = vmatprep.subr.bf16.mxu0 0
        %815 = vmatpush2.bf16.msra.mxu0 0
        %816 = vmatprep.subr.bf16.mxu0 0
        %817 = vmatpush2.bf16.msra.mxu0 0
        %818 = vmatprep.subr.bf16.mxu0 0
        %819 = vmatpush2.bf16.msra.mxu0 0
        %820 = vmatprep.mubr.bf16.mxu0 0
        %821 = vmatmul.mubr.bf16.gmra.mxu0 %v569
        %v822 = vpop.f32.mrf.mxu0
        %v823 = vadd.f32 %v615, %v822
        %v824 = vpop.f32.mrf.mxu0
        %v825 = vpop.f32.mrf.mxu0
        %v826 = vpop.f32.mrf.mxu0
        %827 = vdwg.mxu0
        %829 = vrot.lane.b32.xlu0 %v782, 96
        %v830 = vpop.permute.xlu0 %829
        %832 = vrot.lane.b32.xlu0 %v782, 64
        %v833 = vpop.permute.xlu0 %832
        %835 = vrot.lane.b32.xlu0 %v782, 32
        %v836 = vpop.permute.xlu0 %835
        %v838 = vcombine.low %v782, %v833
        %v839 = vcombine.high %v782, %v833
        %v841 = vunpack.c.l.s4 1983009808
        %v842 = vunpack.c.0.s8 %v841
        %v843 = vlaneseq
        %v844 = vshrl.u32 %v843, 7
        %v845 = vsub.s32 %v842, %v844
        %v846 = vrot.slane %v838, %v845
        %v848 = vunpack.c.l.s4 1983009808
        %v849 = vunpack.c.0.s8 %v848
        %v850 = vlaneseq
        %v851 = vshrl.u32 %v850, 7
        %v852 = vsub.s32 %v849, %v851
        %v853 = vrot.slane %v839, %v852
        %v854 = vcombine.low %v830, %v836
        %v855 = vcombine.high %v830, %v836
        %v857 = vunpack.c.l.s4 1983009808
        %v858 = vunpack.c.0.s8 %v857
        %v859 = vlaneseq
        %v860 = vshrl.u32 %v859, 7
        %v861 = vsub.s32 %v858, %v860
        %v862 = vrot.slane %v854, %v861
        %v864 = vunpack.c.l.s4 1983009808
        %v865 = vunpack.c.0.s8 %v864
        %v866 = vlaneseq
        %v867 = vshrl.u32 %v866, 7
        %v868 = vsub.s32 %v865, %v867
        %v869 = vrot.slane %v855, %v868
        %v870 = vcombine.low %v846, %v862
        %v871 = vcombine.high %v846, %v862
        %v873 = vunpack.c.l.s4 1934713408
        %v874 = vunpack.c.0.s8 %v873
        %v875 = vlaneseq
        %v876 = vshrl.u32 %v875, 7
        %v877 = vsub.s32 %v874, %v876
        %v878 = vrot.slane %v870, %v877
        %v880 = vunpack.c.l.s4 1934713408
        %v881 = vunpack.c.0.s8 %v880
        %v882 = vlaneseq
        %v883 = vshrl.u32 %v882, 7
        %v884 = vsub.s32 %v881, %v883
        %v885 = vrot.slane %v871, %v884
        %v886 = vcombine.low %v853, %v869
        %v887 = vcombine.high %v853, %v869
        %v889 = vunpack.c.l.s4 1934713408
        %v890 = vunpack.c.0.s8 %v889
        %v891 = vlaneseq
        %v892 = vshrl.u32 %v891, 7
        %v893 = vsub.s32 %v890, %v892
        %v894 = vrot.slane %v886, %v893
        %v896 = vunpack.c.l.s4 1934713408
        %v897 = vunpack.c.0.s8 %v896
        %v898 = vlaneseq
        %v899 = vshrl.u32 %v898, 7
        %v900 = vsub.s32 %v897, %v899
        %v901 = vrot.slane %v887, %v900
        %v902 = vcombine.high %v878, 0.0
        %v903 = vcombine.high %v885, 0.0
        %v904 = vcombine.high %v894, 0.0
        %v905 = vcombine.high %v901, 0.0
        %v906 = vcombine.low %v878, %v885
        %v908 = vunpack.c.l.s4 1983009808
        %v909 = vunpack.c.0.s8 %v908
        %v910 = vlaneseq
        %v911 = vshrl.u32 %v910, 7
        %v912 = vsub.s32 %v909, %v911
        %v913 = vrot.slane %v906, %v912
        %v914 = vcombine.low %v902, %v903
        %v916 = vunpack.c.l.s4 1983009808
        %v917 = vunpack.c.0.s8 %v916
        %v918 = vlaneseq
        %v919 = vshrl.u32 %v918, 7
        %v920 = vsub.s32 %v917, %v919
        %v921 = vrot.slane %v914, %v920
        %v922 = vcombine.low %v894, %v901
        %v924 = vunpack.c.l.s4 1983009808
        %v925 = vunpack.c.0.s8 %v924
        %v926 = vlaneseq
        %v927 = vshrl.u32 %v926, 7
        %v928 = vsub.s32 %v925, %v927
        %v929 = vrot.slane %v922, %v928
        %v930 = vcombine.low %v904, %v905
        %v932 = vunpack.c.l.s4 1983009808
        %v933 = vunpack.c.0.s8 %v932
        %v934 = vlaneseq
        %v935 = vshrl.u32 %v934, 7
        %v936 = vsub.s32 %v933, %v935
        %v937 = vrot.slane %v930, %v936
        %v938 = vcombine.low %v913, %v921
        %v939 = vcombine.high %v913, %v921
        %v941 = vunpack.c.l.s4 1934713408
        %v942 = vunpack.c.0.s8 %v941
        %v943 = vlaneseq
        %v944 = vshrl.u32 %v943, 7
        %v945 = vsub.s32 %v942, %v944
        %v946 = vrot.slane %v938, %v945
        %v948 = vunpack.c.l.s4 1934713408
        %v949 = vunpack.c.0.s8 %v948
        %v950 = vlaneseq
        %v951 = vshrl.u32 %v950, 7
        %v952 = vsub.s32 %v949, %v951
        %v953 = vrot.slane %v939, %v952
        %v954 = vcombine.low %v929, %v937
        %v955 = vcombine.high %v929, %v937
        %v957 = vunpack.c.l.s4 1934713408
        %v958 = vunpack.c.0.s8 %v957
        %v959 = vlaneseq
        %v960 = vshrl.u32 %v959, 7
        %v961 = vsub.s32 %v958, %v960
        %v962 = vrot.slane %v954, %v961
        %v964 = vunpack.c.l.s4 1934713408
        %v965 = vunpack.c.0.s8 %v964
        %v966 = vlaneseq
        %v967 = vshrl.u32 %v966, 7
        %v968 = vsub.s32 %v965, %v967
        %v969 = vrot.slane %v955, %v968
        %v970 = vcombine.low %v946, %v962
        %v971 = vcombine.high %v946, %v962
        %v972 = vcombine.low %v953, %v969
        %v973 = vcombine.high %v953, %v969
        %975 = vrot.lane.b32.xlu0 %v784, 96
        %v976 = vpop.permute.xlu0 %975
        %978 = vrot.lane.b32.xlu0 %v784, 64
        %v979 = vpop.permute.xlu0 %978
        %981 = vrot.lane.b32.xlu0 %v784, 32
        %v982 = vpop.permute.xlu0 %981
        %v984 = vcombine.low %v784, %v979
        %v985 = vcombine.high %v784, %v979
        %v987 = vunpack.c.l.s4 1983009808
        %v988 = vunpack.c.0.s8 %v987
        %v989 = vlaneseq
        %v990 = vshrl.u32 %v989, 7
        %v991 = vsub.s32 %v988, %v990
        %v992 = vrot.slane %v984, %v991
        %v994 = vunpack.c.l.s4 1983009808
        %v995 = vunpack.c.0.s8 %v994
        %v996 = vlaneseq
        %v997 = vshrl.u32 %v996, 7
        %v998 = vsub.s32 %v995, %v997
        %v999 = vrot.slane %v985, %v998
        %v1000 = vcombine.low %v976, %v982
        %v1001 = vcombine.high %v976, %v982
        %v1003 = vunpack.c.l.s4 1983009808
        %v1004 = vunpack.c.0.s8 %v1003
        %v1005 = vlaneseq
        %v1006 = vshrl.u32 %v1005, 7
        %v1007 = vsub.s32 %v1004, %v1006
        %v1008 = vrot.slane %v1000, %v1007
        %v1010 = vunpack.c.l.s4 1983009808
        %v1011 = vunpack.c.0.s8 %v1010
        %v1012 = vlaneseq
        %v1013 = vshrl.u32 %v1012, 7
        %v1014 = vsub.s32 %v1011, %v1013
        %v1015 = vrot.slane %v1001, %v1014
        %v1016 = vcombine.low %v992, %v1008
        %v1017 = vcombine.high %v992, %v1008
        %v1019 = vunpack.c.l.s4 1934713408
        %v1020 = vunpack.c.0.s8 %v1019
        %v1021 = vlaneseq
        %v1022 = vshrl.u32 %v1021, 7
        %v1023 = vsub.s32 %v1020, %v1022
        %v1024 = vrot.slane %v1016, %v1023
        %v1026 = vunpack.c.l.s4 1934713408
        %v1027 = vunpack.c.0.s8 %v1026
        %v1028 = vlaneseq
        %v1029 = vshrl.u32 %v1028, 7
        %v1030 = vsub.s32 %v1027, %v1029
        %v1031 = vrot.slane %v1017, %v1030
        %v1032 = vcombine.low %v999, %v1015
        %v1033 = vcombine.high %v999, %v1015
        %v1035 = vunpack.c.l.s4 1934713408
        %v1036 = vunpack.c.0.s8 %v1035
        %v1037 = vlaneseq
        %v1038 = vshrl.u32 %v1037, 7
        %v1039 = vsub.s32 %v1036, %v1038
        %v1040 = vrot.slane %v1032, %v1039
        %v1042 = vunpack.c.l.s4 1934713408
        %v1043 = vunpack.c.0.s8 %v1042
        %v1044 = vlaneseq
        %v1045 = vshrl.u32 %v1044, 7
        %v1046 = vsub.s32 %v1043, %v1045
        %v1047 = vrot.slane %v1033, %v1046
        %v1048 = vcombine.high %v1024, 0.0
        %v1049 = vcombine.high %v1031, 0.0
        %v1050 = vcombine.high %v1040, 0.0
        %v1051 = vcombine.high %v1047, 0.0
        %v1052 = vcombine.low %v1024, %v1031
        %v1054 = vunpack.c.l.s4 1983009808
        %v1055 = vunpack.c.0.s8 %v1054
        %v1056 = vlaneseq
        %v1057 = vshrl.u32 %v1056, 7
        %v1058 = vsub.s32 %v1055, %v1057
        %v1059 = vrot.slane %v1052, %v1058
        %v1060 = vcombine.low %v1048, %v1049
        %v1062 = vunpack.c.l.s4 1983009808
        %v1063 = vunpack.c.0.s8 %v1062
        %v1064 = vlaneseq
        %v1065 = vshrl.u32 %v1064, 7
        %v1066 = vsub.s32 %v1063, %v1065
        %v1067 = vrot.slane %v1060, %v1066
        %v1068 = vcombine.low %v1040, %v1047
        %v1070 = vunpack.c.l.s4 1983009808
        %v1071 = vunpack.c.0.s8 %v1070
        %v1072 = vlaneseq
        %v1073 = vshrl.u32 %v1072, 7
        %v1074 = vsub.s32 %v1071, %v1073
        %v1075 = vrot.slane %v1068, %v1074
        %v1076 = vcombine.low %v1050, %v1051
        %v1078 = vunpack.c.l.s4 1983009808
        %v1079 = vunpack.c.0.s8 %v1078
        %v1080 = vlaneseq
        %v1081 = vshrl.u32 %v1080, 7
        %v1082 = vsub.s32 %v1079, %v1081
        %v1083 = vrot.slane %v1076, %v1082
        %v1084 = vcombine.low %v1059, %v1067
        %v1085 = vcombine.high %v1059, %v1067
        %v1087 = vunpack.c.l.s4 1934713408
        %v1088 = vunpack.c.0.s8 %v1087
        %v1089 = vlaneseq
        %v1090 = vshrl.u32 %v1089, 7
        %v1091 = vsub.s32 %v1088, %v1090
        %v1092 = vrot.slane %v1084, %v1091
        %v1094 = vunpack.c.l.s4 1934713408
        %v1095 = vunpack.c.0.s8 %v1094
        %v1096 = vlaneseq
        %v1097 = vshrl.u32 %v1096, 7
        %v1098 = vsub.s32 %v1095, %v1097
        %v1099 = vrot.slane %v1085, %v1098
        %v1100 = vcombine.low %v1075, %v1083
        %v1101 = vcombine.high %v1075, %v1083
        %v1103 = vunpack.c.l.s4 1934713408
        %v1104 = vunpack.c.0.s8 %v1103
        %v1105 = vlaneseq
        %v1106 = vshrl.u32 %v1105, 7
        %v1107 = vsub.s32 %v1104, %v1106
        %v1108 = vrot.slane %v1100, %v1107
        %v1110 = vunpack.c.l.s4 1934713408
        %v1111 = vunpack.c.0.s8 %v1110
        %v1112 = vlaneseq
        %v1113 = vshrl.u32 %v1112, 7
        %v1114 = vsub.s32 %v1111, %v1113
        %v1115 = vrot.slane %v1101, %v1114
        %v1116 = vcombine.low %v1092, %v1108
        %v1117 = vcombine.high %v1092, %v1108
        %v1118 = vcombine.low %v1099, %v1115
        %v1119 = vcombine.high %v1099, %v1115
        %1121 = vrot.lane.b32.xlu0 %v823, 96
        %v1122 = vpop.permute.xlu0 %1121
        %1124 = vrot.lane.b32.xlu0 %v823, 64
        %v1125 = vpop.permute.xlu0 %1124
        %1127 = vrot.lane.b32.xlu0 %v823, 32
        %v1128 = vpop.permute.xlu0 %1127
        %v1130 = vcombine.low %v823, %v1125
        %v1131 = vcombine.high %v823, %v1125
        %v1133 = vunpack.c.l.s4 1983009808
        %v1134 = vunpack.c.0.s8 %v1133
        %v1135 = vlaneseq
        %v1136 = vshrl.u32 %v1135, 7
        %v1137 = vsub.s32 %v1134, %v1136
        %v1138 = vrot.slane %v1130, %v1137
        %v1140 = vunpack.c.l.s4 1983009808
        %v1141 = vunpack.c.0.s8 %v1140
        %v1142 = vlaneseq
        %v1143 = vshrl.u32 %v1142, 7
        %v1144 = vsub.s32 %v1141, %v1143
        %v1145 = vrot.slane %v1131, %v1144
        %v1146 = vcombine.low %v1122, %v1128
        %v1147 = vcombine.high %v1122, %v1128
        %v1149 = vunpack.c.l.s4 1983009808
        %v1150 = vunpack.c.0.s8 %v1149
        %v1151 = vlaneseq
        %v1152 = vshrl.u32 %v1151, 7
        %v1153 = vsub.s32 %v1150, %v1152
        %v1154 = vrot.slane %v1146, %v1153
        %v1156 = vunpack.c.l.s4 1983009808
        %v1157 = vunpack.c.0.s8 %v1156
        %v1158 = vlaneseq
        %v1159 = vshrl.u32 %v1158, 7
        %v1160 = vsub.s32 %v1157, %v1159
        %v1161 = vrot.slane %v1147, %v1160
        %v1162 = vcombine.low %v1138, %v1154
        %v1163 = vcombine.high %v1138, %v1154
        %v1165 = vunpack.c.l.s4 1934713408
        %v1166 = vunpack.c.0.s8 %v1165
        %v1167 = vlaneseq
        %v1168 = vshrl.u32 %v1167, 7
        %v1169 = vsub.s32 %v1166, %v1168
        %v1170 = vrot.slane %v1162, %v1169
        %v1172 = vunpack.c.l.s4 1934713408
        %v1173 = vunpack.c.0.s8 %v1172
        %v1174 = vlaneseq
        %v1175 = vshrl.u32 %v1174, 7
        %v1176 = vsub.s32 %v1173, %v1175
        %v1177 = vrot.slane %v1163, %v1176
        %v1178 = vcombine.low %v1145, %v1161
        %v1179 = vcombine.high %v1145, %v1161
        %v1181 = vunpack.c.l.s4 1934713408
        %v1182 = vunpack.c.0.s8 %v1181
        %v1183 = vlaneseq
        %v1184 = vshrl.u32 %v1183, 7
        %v1185 = vsub.s32 %v1182, %v1184
        %v1186 = vrot.slane %v1178, %v1185
        %v1188 = vunpack.c.l.s4 1934713408
        %v1189 = vunpack.c.0.s8 %v1188
        %v1190 = vlaneseq
        %v1191 = vshrl.u32 %v1190, 7
        %v1192 = vsub.s32 %v1189, %v1191
        %v1193 = vrot.slane %v1179, %v1192
        %v1194 = vcombine.high %v1170, 0.0
        %v1195 = vcombine.high %v1177, 0.0
        %v1196 = vcombine.high %v1186, 0.0
        %v1197 = vcombine.high %v1193, 0.0
        %v1198 = vcombine.low %v1170, %v1177
        %v1200 = vunpack.c.l.s4 1983009808
        %v1201 = vunpack.c.0.s8 %v1200
        %v1202 = vlaneseq
        %v1203 = vshrl.u32 %v1202, 7
        %v1204 = vsub.s32 %v1201, %v1203
        %v1205 = vrot.slane %v1198, %v1204
        %v1206 = vcombine.low %v1194, %v1195
        %v1208 = vunpack.c.l.s4 1983009808
        %v1209 = vunpack.c.0.s8 %v1208
        %v1210 = vlaneseq
        %v1211 = vshrl.u32 %v1210, 7
        %v1212 = vsub.s32 %v1209, %v1211
        %v1213 = vrot.slane %v1206, %v1212
        %v1214 = vcombine.low %v1186, %v1193
        %v1216 = vunpack.c.l.s4 1983009808
        %v1217 = vunpack.c.0.s8 %v1216
        %v1218 = vlaneseq
        %v1219 = vshrl.u32 %v1218, 7
        %v1220 = vsub.s32 %v1217, %v1219
        %v1221 = vrot.slane %v1214, %v1220
        %v1222 = vcombine.low %v1196, %v1197
        %v1224 = vunpack.c.l.s4 1983009808
        %v1225 = vunpack.c.0.s8 %v1224
        %v1226 = vlaneseq
        %v1227 = vshrl.u32 %v1226, 7
        %v1228 = vsub.s32 %v1225, %v1227
        %v1229 = vrot.slane %v1222, %v1228
        %v1230 = vcombine.low %v1205, %v1213
        %v1231 = vcombine.high %v1205, %v1213
        %v1233 = vunpack.c.l.s4 1934713408
        %v1234 = vunpack.c.0.s8 %v1233
        %v1235 = vlaneseq
        %v1236 = vshrl.u32 %v1235, 7
        %v1237 = vsub.s32 %v1234, %v1236
        %v1238 = vrot.slane %v1230, %v1237
        %v1240 = vunpack.c.l.s4 1934713408
        %v1241 = vunpack.c.0.s8 %v1240
        %v1242 = vlaneseq
        %v1243 = vshrl.u32 %v1242, 7
        %v1244 = vsub.s32 %v1241, %v1243
        %v1245 = vrot.slane %v1231, %v1244
        %v1246 = vcombine.low %v1221, %v1229
        %v1247 = vcombine.high %v1221, %v1229
        %v1249 = vunpack.c.l.s4 1934713408
        %v1250 = vunpack.c.0.s8 %v1249
        %v1251 = vlaneseq
        %v1252 = vshrl.u32 %v1251, 7
        %v1253 = vsub.s32 %v1250, %v1252
        %v1254 = vrot.slane %v1246, %v1253
        %v1256 = vunpack.c.l.s4 1934713408
        %v1257 = vunpack.c.0.s8 %v1256
        %v1258 = vlaneseq
        %v1259 = vshrl.u32 %v1258, 7
        %v1260 = vsub.s32 %v1257, %v1259
        %v1261 = vrot.slane %v1247, %v1260
        %v1262 = vcombine.low %v1238, %v1254
        %v1263 = vcombine.high %v1238, %v1254
        %v1264 = vcombine.low %v1245, %v1261
        %v1265 = vcombine.high %v1245, %v1261
        %vm1266 = vcmask 261120
        %v1268 = vsel %vm1266, %v970, 0
        %v1271 = vsel %vm1266, %v1116, 0
        %1273 = vmatprep.subr.mxu0 0.0
        %1274 = vmatpush1.xpose.msra.mxu0 0.0
        %1275 = vmatprep.subr.mxu0 0.0
        %1276 = vmatpush1.xpose.msra.mxu0 0.0
        %1277 = vmatprep.subr.mxu0 0.0
        %1278 = vmatpush1.xpose.msra.mxu0 0.0
        %1279 = vmatprep.subr.mxu0 0.0
        %1280 = vmatpush1.xpose.msra.mxu0 0.0
        %1281 = vmatprep.subr.mxu0 0.0
        %1282 = vmatpush1.xpose.msra.mxu0 0.0
        %1283 = vmatprep.subr.mxu0 0.0
        %1284 = vmatpush1.xpose.msra.mxu0 0.0
        %1285 = vmatprep.subr.mxu0 0.0
        %1286 = vmatpush1.xpose.msra.mxu0 0.0
        %1287 = vmatprep.subr.mxu0 0.0
        %1288 = vmatpush1.xpose.msra.mxu0 0.0
        %1289 = vmatprep.subr.mxu0 0.0
        %1290 = vmatpush1.xpose.msra.mxu0 0.0
        %1291 = vmatprep.subr.mxu0 0.0
        %1292 = vmatpush1.xpose.msra.mxu0 0.0
        %1293 = vmatprep.subr.mxu0 0.0
        %1294 = vmatpush1.xpose.msra.mxu0 0.0
        %1295 = vmatprep.subr.mxu0 0.0
        %1296 = vmatpush1.xpose.msra.mxu0 0.0
        %1297 = vmatprep.subr.mxu0 0.0
        %1298 = vmatpush1.xpose.msra.mxu0 0.0
        %1299 = vmatprep.subr.mxu0 0.0
        %1300 = vmatpush1.xpose.msra.mxu0 0.0
        %1301 = vmatprep.subr.mxu0 0.0
        %1302 = vmatpush1.xpose.msra.mxu0 0.0
        %1303 = vmatprep.subr.mxu0 0.0
        %1304 = vmatpush1.xpose.msra.mxu0 %v1271
        %1305 = vmatprep.subr.mxu0 0.0
        %1306 = vmatpush2.xpose.msra.mxu0 0.0
        %1307 = vmatprep.subr.mxu0 0.0
        %1308 = vmatpush2.xpose.msra.mxu0 0.0
        %1309 = vmatprep.subr.mxu0 0.0
        %1310 = vmatpush2.xpose.msra.mxu0 0.0
        %1311 = vmatprep.subr.mxu0 0.0
        %1312 = vmatpush2.xpose.msra.mxu0 0.0
        %1313 = vmatprep.subr.mxu0 0.0
        %1314 = vmatpush2.xpose.msra.mxu0 0.0
        %1315 = vmatprep.subr.mxu0 0.0
        %1316 = vmatpush2.xpose.msra.mxu0 0.0
        %1317 = vmatprep.subr.mxu0 0.0
        %1318 = vmatpush2.xpose.msra.mxu0 0.0
        %1319 = vmatprep.subr.mxu0 0.0
        %1320 = vmatpush2.xpose.msra.mxu0 0.0
        %1321 = vmatprep.subr.mxu0 0.0
        %1322 = vmatpush2.xpose.msra.mxu0 0.0
        %1323 = vmatprep.subr.mxu0 0.0
        %1324 = vmatpush2.xpose.msra.mxu0 0.0
        %1325 = vmatprep.subr.mxu0 0.0
        %1326 = vmatpush2.xpose.msra.mxu0 0.0
        %1327 = vmatprep.subr.mxu0 0.0
        %1328 = vmatpush2.xpose.msra.mxu0 0.0
        %1329 = vmatprep.subr.mxu0 0.0
        %1330 = vmatpush2.xpose.msra.mxu0 0.0
        %1331 = vmatprep.subr.mxu0 0.0
        %1332 = vmatpush2.xpose.msra.mxu0 0.0
        %1333 = vmatprep.subr.mxu0 0.0
        %1334 = vmatpush2.xpose.msra.mxu0 0.0
        %1335 = vmatprep.subr.mxu0 0.0
        %1336 = vmatpush2.xpose.msra.mxu0 0.0
        %1337 = vmatprep.mubr.f32.mxu0 0.0
        %1338 = vmatmul.mubr.f32.gmra.mxu0 %v1268
        %v1339 = vpop.f32.mrf.mxu0
        %v1340 = vadd.f32 0.0, %v1339
        %v1341 = vpop.f32.mrf.mxu0
        %1342 = vdwg.mxu0
        %v1344 = vsel %vm1266, %v971, 0
        %v1347 = vsel %vm1266, %v1117, 0
        %1349 = vmatprep.subr.mxu0 0.0
        %1350 = vmatpush1.xpose.msra.mxu0 0.0
        %1351 = vmatprep.subr.mxu0 0.0
        %1352 = vmatpush1.xpose.msra.mxu0 0.0
        %1353 = vmatprep.subr.mxu0 0.0
        %1354 = vmatpush1.xpose.msra.mxu0 0.0
        %1355 = vmatprep.subr.mxu0 0.0
        %1356 = vmatpush1.xpose.msra.mxu0 0.0
        %1357 = vmatprep.subr.mxu0 0.0
        %1358 = vmatpush1.xpose.msra.mxu0 0.0
        %1359 = vmatprep.subr.mxu0 0.0
        %1360 = vmatpush1.xpose.msra.mxu0 0.0
        %1361 = vmatprep.subr.mxu0 0.0
        %1362 = vmatpush1.xpose.msra.mxu0 0.0
        %1363 = vmatprep.subr.mxu0 0.0
        %1364 = vmatpush1.xpose.msra.mxu0 0.0
        %1365 = vmatprep.subr.mxu0 0.0
        %1366 = vmatpush1.xpose.msra.mxu0 0.0
        %1367 = vmatprep.subr.mxu0 0.0
        %1368 = vmatpush1.xpose.msra.mxu0 0.0
        %1369 = vmatprep.subr.mxu0 0.0
        %1370 = vmatpush1.xpose.msra.mxu0 0.0
        %1371 = vmatprep.subr.mxu0 0.0
        %1372 = vmatpush1.xpose.msra.mxu0 0.0
        %1373 = vmatprep.subr.mxu0 0.0
        %1374 = vmatpush1.xpose.msra.mxu0 0.0
        %1375 = vmatprep.subr.mxu0 0.0
        %1376 = vmatpush1.xpose.msra.mxu0 0.0
        %1377 = vmatprep.subr.mxu0 0.0
        %1378 = vmatpush1.xpose.msra.mxu0 0.0
        %1379 = vmatprep.subr.mxu0 0.0
        %1380 = vmatpush1.xpose.msra.mxu0 %v1347
        %1381 = vmatprep.subr.mxu0 0.0
        %1382 = vmatpush2.xpose.msra.mxu0 0.0
        %1383 = vmatprep.subr.mxu0 0.0
        %1384 = vmatpush2.xpose.msra.mxu0 0.0
        %1385 = vmatprep.subr.mxu0 0.0
        %1386 = vmatpush2.xpose.msra.mxu0 0.0
        %1387 = vmatprep.subr.mxu0 0.0
        %1388 = vmatpush2.xpose.msra.mxu0 0.0
        %1389 = vmatprep.subr.mxu0 0.0
        %1390 = vmatpush2.xpose.msra.mxu0 0.0
        %1391 = vmatprep.subr.mxu0 0.0
        %1392 = vmatpush2.xpose.msra.mxu0 0.0
        %1393 = vmatprep.subr.mxu0 0.0
        %1394 = vmatpush2.xpose.msra.mxu0 0.0
        %1395 = vmatprep.subr.mxu0 0.0
        %1396 = vmatpush2.xpose.msra.mxu0 0.0
        %1397 = vmatprep.subr.mxu0 0.0
        %1398 = vmatpush2.xpose.msra.mxu0 0.0
        %1399 = vmatprep.subr.mxu0 0.0
        %1400 = vmatpush2.xpose.msra.mxu0 0.0
        %1401 = vmatprep.subr.mxu0 0.0
        %1402 = vmatpush2.xpose.msra.mxu0 0.0
        %1403 = vmatprep.subr.mxu0 0.0
        %1404 = vmatpush2.xpose.msra.mxu0 0.0
        %1405 = vmatprep.subr.mxu0 0.0
        %1406 = vmatpush2.xpose.msra.mxu0 0.0
        %1407 = vmatprep.subr.mxu0 0.0
        %1408 = vmatpush2.xpose.msra.mxu0 0.0
        %1409 = vmatprep.subr.mxu0 0.0
        %1410 = vmatpush2.xpose.msra.mxu0 0.0
        %1411 = vmatprep.subr.mxu0 0.0
        %1412 = vmatpush2.xpose.msra.mxu0 0.0
        %1413 = vmatprep.mubr.f32.mxu0 0.0
        %1414 = vmatmul.mubr.f32.gmra.mxu0 %v1344
        %v1415 = vpop.f32.mrf.mxu0
        %v1416 = vadd.f32 0.0, %v1415
        %v1417 = vpop.f32.mrf.mxu0
        %1418 = vdwg.mxu0
        %v1420 = vsel %vm1266, %v972, 0
        %v1423 = vsel %vm1266, %v1118, 0
        %1425 = vmatprep.subr.mxu0 0.0
        %1426 = vmatpush1.xpose.msra.mxu0 0.0
        %1427 = vmatprep.subr.mxu0 0.0
        %1428 = vmatpush1.xpose.msra.mxu0 0.0
        %1429 = vmatprep.subr.mxu0 0.0
        %1430 = vmatpush1.xpose.msra.mxu0 0.0
        %1431 = vmatprep.subr.mxu0 0.0
        %1432 = vmatpush1.xpose.msra.mxu0 0.0
        %1433 = vmatprep.subr.mxu0 0.0
        %1434 = vmatpush1.xpose.msra.mxu0 0.0
        %1435 = vmatprep.subr.mxu0 0.0
        %1436 = vmatpush1.xpose.msra.mxu0 0.0
        %1437 = vmatprep.subr.mxu0 0.0
        %1438 = vmatpush1.xpose.msra.mxu0 0.0
        %1439 = vmatprep.subr.mxu0 0.0
        %1440 = vmatpush1.xpose.msra.mxu0 0.0
        %1441 = vmatprep.subr.mxu0 0.0
        %1442 = vmatpush1.xpose.msra.mxu0 0.0
        %1443 = vmatprep.subr.mxu0 0.0
        %1444 = vmatpush1.xpose.msra.mxu0 0.0
        %1445 = vmatprep.subr.mxu0 0.0
        %1446 = vmatpush1.xpose.msra.mxu0 0.0
        %1447 = vmatprep.subr.mxu0 0.0
        %1448 = vmatpush1.xpose.msra.mxu0 0.0
        %1449 = vmatprep.subr.mxu0 0.0
        %1450 = vmatpush1.xpose.msra.mxu0 0.0
        %1451 = vmatprep.subr.mxu0 0.0
        %1452 = vmatpush1.xpose.msra.mxu0 0.0
        %1453 = vmatprep.subr.mxu0 0.0
        %1454 = vmatpush1.xpose.msra.mxu0 0.0
        %1455 = vmatprep.subr.mxu0 0.0
        %1456 = vmatpush1.xpose.msra.mxu0 %v1423
        %1457 = vmatprep.subr.mxu0 0.0
        %1458 = vmatpush2.xpose.msra.mxu0 0.0
        %1459 = vmatprep.subr.mxu0 0.0
        %1460 = vmatpush2.xpose.msra.mxu0 0.0
        %1461 = vmatprep.subr.mxu0 0.0
        %1462 = vmatpush2.xpose.msra.mxu0 0.0
        %1463 = vmatprep.subr.mxu0 0.0
        %1464 = vmatpush2.xpose.msra.mxu0 0.0
        %1465 = vmatprep.subr.mxu0 0.0
        %1466 = vmatpush2.xpose.msra.mxu0 0.0
        %1467 = vmatprep.subr.mxu0 0.0
        %1468 = vmatpush2.xpose.msra.mxu0 0.0
        %1469 = vmatprep.subr.mxu0 0.0
        %1470 = vmatpush2.xpose.msra.mxu0 0.0
        %1471 = vmatprep.subr.mxu0 0.0
        %1472 = vmatpush2.xpose.msra.mxu0 0.0
        %1473 = vmatprep.subr.mxu0 0.0
        %1474 = vmatpush2.xpose.msra.mxu0 0.0
        %1475 = vmatprep.subr.mxu0 0.0
        %1476 = vmatpush2.xpose.msra.mxu0 0.0
        %1477 = vmatprep.subr.mxu0 0.0
        %1478 = vmatpush2.xpose.msra.mxu0 0.0
        %1479 = vmatprep.subr.mxu0 0.0
        %1480 = vmatpush2.xpose.msra.mxu0 0.0
        %1481 = vmatprep.subr.mxu0 0.0
        %1482 = vmatpush2.xpose.msra.mxu0 0.0
        %1483 = vmatprep.subr.mxu0 0.0
        %1484 = vmatpush2.xpose.msra.mxu0 0.0
        %1485 = vmatprep.subr.mxu0 0.0
        %1486 = vmatpush2.xpose.msra.mxu0 0.0
        %1487 = vmatprep.subr.mxu0 0.0
        %1488 = vmatpush2.xpose.msra.mxu0 0.0
        %1489 = vmatprep.mubr.f32.mxu0 0.0
        %1490 = vmatmul.mubr.f32.gmra.mxu0 %v1420
        %v1491 = vpop.f32.mrf.mxu0
        %v1492 = vadd.f32 0.0, %v1491
        %v1493 = vpop.f32.mrf.mxu0
        %1494 = vdwg.mxu0
        %v1496 = vsel %vm1266, %v973, 0
        %v1499 = vsel %vm1266, %v1119, 0
        %1501 = vmatprep.subr.mxu0 0.0
        %1502 = vmatpush1.xpose.msra.mxu0 0.0
        %1503 = vmatprep.subr.mxu0 0.0
        %1504 = vmatpush1.xpose.msra.mxu0 0.0
        %1505 = vmatprep.subr.mxu0 0.0
        %1506 = vmatpush1.xpose.msra.mxu0 0.0
        %1507 = vmatprep.subr.mxu0 0.0
        %1508 = vmatpush1.xpose.msra.mxu0 0.0
        %1509 = vmatprep.subr.mxu0 0.0
        %1510 = vmatpush1.xpose.msra.mxu0 0.0
        %1511 = vmatprep.subr.mxu0 0.0
        %1512 = vmatpush1.xpose.msra.mxu0 0.0
        %1513 = vmatprep.subr.mxu0 0.0
        %1514 = vmatpush1.xpose.msra.mxu0 0.0
        %1515 = vmatprep.subr.mxu0 0.0
        %1516 = vmatpush1.xpose.msra.mxu0 0.0
        %1517 = vmatprep.subr.mxu0 0.0
        %1518 = vmatpush1.xpose.msra.mxu0 0.0
        %1519 = vmatprep.subr.mxu0 0.0
        %1520 = vmatpush1.xpose.msra.mxu0 0.0
        %1521 = vmatprep.subr.mxu0 0.0
        %1522 = vmatpush1.xpose.msra.mxu0 0.0
        %1523 = vmatprep.subr.mxu0 0.0
        %1524 = vmatpush1.xpose.msra.mxu0 0.0
        %1525 = vmatprep.subr.mxu0 0.0
        %1526 = vmatpush1.xpose.msra.mxu0 0.0
        %1527 = vmatprep.subr.mxu0 0.0
        %1528 = vmatpush1.xpose.msra.mxu0 0.0
        %1529 = vmatprep.subr.mxu0 0.0
        %1530 = vmatpush1.xpose.msra.mxu0 0.0
        %1531 = vmatprep.subr.mxu0 0.0
        %1532 = vmatpush1.xpose.msra.mxu0 %v1499
        %1533 = vmatprep.subr.mxu0 0.0
        %1534 = vmatpush2.xpose.msra.mxu0 0.0
        %1535 = vmatprep.subr.mxu0 0.0
        %1536 = vmatpush2.xpose.msra.mxu0 0.0
        %1537 = vmatprep.subr.mxu0 0.0
        %1538 = vmatpush2.xpose.msra.mxu0 0.0
        %1539 = vmatprep.subr.mxu0 0.0
        %1540 = vmatpush2.xpose.msra.mxu0 0.0
        %1541 = vmatprep.subr.mxu0 0.0
        %1542 = vmatpush2.xpose.msra.mxu0 0.0
        %1543 = vmatprep.subr.mxu0 0.0
        %1544 = vmatpush2.xpose.msra.mxu0 0.0
        %1545 = vmatprep.subr.mxu0 0.0
        %1546 = vmatpush2.xpose.msra.mxu0 0.0
        %1547 = vmatprep.subr.mxu0 0.0
        %1548 = vmatpush2.xpose.msra.mxu0 0.0
        %1549 = vmatprep.subr.mxu0 0.0
        %1550 = vmatpush2.xpose.msra.mxu0 0.0
        %1551 = vmatprep.subr.mxu0 0.0
        %1552 = vmatpush2.xpose.msra.mxu0 0.0
        %1553 = vmatprep.subr.mxu0 0.0
        %1554 = vmatpush2.xpose.msra.mxu0 0.0
        %1555 = vmatprep.subr.mxu0 0.0
        %1556 = vmatpush2.xpose.msra.mxu0 0.0
        %1557 = vmatprep.subr.mxu0 0.0
        %1558 = vmatpush2.xpose.msra.mxu0 0.0
        %1559 = vmatprep.subr.mxu0 0.0
        %1560 = vmatpush2.xpose.msra.mxu0 0.0
        %1561 = vmatprep.subr.mxu0 0.0
        %1562 = vmatpush2.xpose.msra.mxu0 0.0
        %1563 = vmatprep.subr.mxu0 0.0
        %1564 = vmatpush2.xpose.msra.mxu0 0.0
        %1565 = vmatprep.mubr.f32.mxu0 0.0
        %1566 = vmatmul.mubr.f32.gmra.mxu0 %v1496
        %v1567 = vpop.f32.mrf.mxu0
        %v1568 = vadd.f32 0.0, %v1567
        %v1569 = vpop.f32.mrf.mxu0
        %1570 = vdwg.mxu0
        %vm1571 = vcmask 64512
        %v1572 = vsel %vm1571, %v1340, -inf
        %1573 = vmax.xlane.f32.xlu0 %v1572
        %v1574 = vpop.xlane.xlu0 %1573
        %v1575 = vsel %vm1571, %v1416, -inf
        %1576 = vmax.xlane.f32.xlu0 %v1575
        %v1577 = vpop.xlane.xlu0 %1576
        %v1578 = vsel %vm1571, %v1492, -inf
        %1579 = vmax.xlane.f32.xlu0 %v1578
        %v1580 = vpop.xlane.xlu0 %1579
        %v1581 = vsel %vm1571, %v1568, -inf
        %1582 = vmax.xlane.f32.xlu0 %v1581
        %v1583 = vpop.xlane.xlu0 %1582
        %v1584 = vsub.f32 %v1340, %v1574
        %v1585 = vsub.f32 %v1416, %v1577
        %v1586 = vsub.f32 %v1492, %v1580
        %v1587 = vsub.f32 %v1568, %v1583
        %v1588 = vmul.f32 %v1584, 1.442695
        %v1589 = vpow.pop %v1588
        %v1590 = vmul.f32 %v1585, 1.442695
        %v1591 = vpow.pop %v1590
        %v1592 = vmul.f32 %v1586, 1.442695
        %v1593 = vpow.pop %v1592
        %v1594 = vmul.f32 %v1587, 1.442695
        %v1595 = vpow.pop %v1594
        %v1596 = vsel %vm1571, %v1589, 0.0
        %1597 = vadd.xlane.f32.xlu0 %v1596
        %v1598 = vpop.xlane.xlu0 %1597
        %v1599 = vsel %vm1571, %v1591, 0.0
        %1600 = vadd.xlane.f32.xlu0 %v1599
        %v1601 = vpop.xlane.xlu0 %1600
        %v1602 = vsel %vm1571, %v1593, 0.0
        %1603 = vadd.xlane.f32.xlu0 %v1602
        %v1604 = vpop.xlane.xlu0 %1603
        %v1605 = vsel %vm1571, %v1595, 0.0
        %1606 = vadd.xlane.f32.xlu0 %v1605
        %v1607 = vpop.xlane.xlu0 %1606
        %v1608 = vrcp.pop %v1598
        %v1609 = vrcp.pop %v1601
        %v1610 = vrcp.pop %v1604
        %v1611 = vrcp.pop %v1607
        %v1612 = vmul.f32 %v1589, %v1608
        %v1613 = vmul.f32 %v1591, %v1609
        %v1614 = vmul.f32 %v1593, %v1610
        %v1615 = vmul.f32 %v1595, %v1611
        %v1617 = vsel %vm1571, %v1612, 0
        %1619 = vmatprep.subr.mxu0 0.0
        %1620 = vmatpush1.msra.mxu0 0.0
        %1621 = vmatprep.subr.mxu0 0.0
        %1622 = vmatpush1.msra.mxu0 0.0
        %1623 = vmatprep.subr.mxu0 0.0
        %1624 = vmatpush1.msra.mxu0 0.0
        %1625 = vmatprep.subr.mxu0 0.0
        %1626 = vmatpush1.msra.mxu0 0.0
        %1627 = vmatprep.subr.mxu0 0.0
        %1628 = vmatpush1.msra.mxu0 0.0
        %1629 = vmatprep.subr.mxu0 0.0
        %1630 = vmatpush1.msra.mxu0 0.0
        %1631 = vmatprep.subr.mxu0 0.0
        %1632 = vmatpush1.msra.mxu0 0.0
        %1633 = vmatprep.subr.mxu0 0.0
        %1634 = vmatpush1.msra.mxu0 0.0
        %1635 = vmatprep.subr.mxu0 0.0
        %1636 = vmatpush1.msra.mxu0 0.0
        %1637 = vmatprep.subr.mxu0 0.0
        %1638 = vmatpush1.msra.mxu0 0.0
        %1639 = vmatprep.subr.mxu0 0.0
        %1640 = vmatpush1.msra.mxu0 0.0
        %1641 = vmatprep.subr.mxu0 0.0
        %1642 = vmatpush1.msra.mxu0 0.0
        %1643 = vmatprep.subr.mxu0 0.0
        %1644 = vmatpush1.msra.mxu0 0.0
        %1645 = vmatprep.subr.mxu0 0.0
        %1646 = vmatpush1.msra.mxu0 0.0
        %1647 = vmatprep.subr.mxu0 0.0
        %1648 = vmatpush1.msra.mxu0 0.0
        %1649 = vmatprep.subr.mxu0 0.0
        %1650 = vmatpush1.msra.mxu0 %v1262
        %1651 = vmatprep.subr.mxu0 0.0
        %1652 = vmatpush2.msra.mxu0 0.0
        %1653 = vmatprep.subr.mxu0 0.0
        %1654 = vmatpush2.msra.mxu0 0.0
        %1655 = vmatprep.subr.mxu0 0.0
        %1656 = vmatpush2.msra.mxu0 0.0
        %1657 = vmatprep.subr.mxu0 0.0
        %1658 = vmatpush2.msra.mxu0 0.0
        %1659 = vmatprep.subr.mxu0 0.0
        %1660 = vmatpush2.msra.mxu0 0.0
        %1661 = vmatprep.subr.mxu0 0.0
        %1662 = vmatpush2.msra.mxu0 0.0
        %1663 = vmatprep.subr.mxu0 0.0
        %1664 = vmatpush2.msra.mxu0 0.0
        %1665 = vmatprep.subr.mxu0 0.0
        %1666 = vmatpush2.msra.mxu0 0.0
        %1667 = vmatprep.subr.mxu0 0.0
        %1668 = vmatpush2.msra.mxu0 0.0
        %1669 = vmatprep.subr.mxu0 0.0
        %1670 = vmatpush2.msra.mxu0 0.0
        %1671 = vmatprep.subr.mxu0 0.0
        %1672 = vmatpush2.msra.mxu0 0.0
        %1673 = vmatprep.subr.mxu0 0.0
        %1674 = vmatpush2.msra.mxu0 0.0
        %1675 = vmatprep.subr.mxu0 0.0
        %1676 = vmatpush2.msra.mxu0 0.0
        %1677 = vmatprep.subr.mxu0 0.0
        %1678 = vmatpush2.msra.mxu0 0.0
        %1679 = vmatprep.subr.mxu0 0.0
        %1680 = vmatpush2.msra.mxu0 0.0
        %1681 = vmatprep.subr.mxu0 0.0
        %1682 = vmatpush2.msra.mxu0 0.0
        %1683 = vmatprep.mubr.f32.mxu0 0.0
        %1684 = vmatmul.mubr.f32.gmra.mxu0 %v1617
        %v1685 = vpop.f32.mrf.mxu0
        %v1686 = vadd.f32 0.0, %v1685
        %v1687 = vpop.f32.mrf.mxu0
        %1688 = vdwg.mxu0
        %v1690 = vsel %vm1571, %v1613, 0
        %1692 = vmatprep.subr.mxu0 0.0
        %1693 = vmatpush1.msra.mxu0 0.0
        %1694 = vmatprep.subr.mxu0 0.0
        %1695 = vmatpush1.msra.mxu0 0.0
        %1696 = vmatprep.subr.mxu0 0.0
        %1697 = vmatpush1.msra.mxu0 0.0
        %1698 = vmatprep.subr.mxu0 0.0
        %1699 = vmatpush1.msra.mxu0 0.0
        %1700 = vmatprep.subr.mxu0 0.0
        %1701 = vmatpush1.msra.mxu0 0.0
        %1702 = vmatprep.subr.mxu0 0.0
        %1703 = vmatpush1.msra.mxu0 0.0
        %1704 = vmatprep.subr.mxu0 0.0
        %1705 = vmatpush1.msra.mxu0 0.0
        %1706 = vmatprep.subr.mxu0 0.0
        %1707 = vmatpush1.msra.mxu0 0.0
        %1708 = vmatprep.subr.mxu0 0.0
        %1709 = vmatpush1.msra.mxu0 0.0
        %1710 = vmatprep.subr.mxu0 0.0
        %1711 = vmatpush1.msra.mxu0 0.0
        %1712 = vmatprep.subr.mxu0 0.0
        %1713 = vmatpush1.msra.mxu0 0.0
        %1714 = vmatprep.subr.mxu0 0.0
        %1715 = vmatpush1.msra.mxu0 0.0
        %1716 = vmatprep.subr.mxu0 0.0
        %1717 = vmatpush1.msra.mxu0 0.0
        %1718 = vmatprep.subr.mxu0 0.0
        %1719 = vmatpush1.msra.mxu0 0.0
        %1720 = vmatprep.subr.mxu0 0.0
        %1721 = vmatpush1.msra.mxu0 0.0
        %1722 = vmatprep.subr.mxu0 0.0
        %1723 = vmatpush1.msra.mxu0 %v1263
        %1724 = vmatprep.subr.mxu0 0.0
        %1725 = vmatpush2.msra.mxu0 0.0
        %1726 = vmatprep.subr.mxu0 0.0
        %1727 = vmatpush2.msra.mxu0 0.0
        %1728 = vmatprep.subr.mxu0 0.0
        %1729 = vmatpush2.msra.mxu0 0.0
        %1730 = vmatprep.subr.mxu0 0.0
        %1731 = vmatpush2.msra.mxu0 0.0
        %1732 = vmatprep.subr.mxu0 0.0
        %1733 = vmatpush2.msra.mxu0 0.0
        %1734 = vmatprep.subr.mxu0 0.0
        %1735 = vmatpush2.msra.mxu0 0.0
        %1736 = vmatprep.subr.mxu0 0.0
        %1737 = vmatpush2.msra.mxu0 0.0
        %1738 = vmatprep.subr.mxu0 0.0
        %1739 = vmatpush2.msra.mxu0 0.0
        %1740 = vmatprep.subr.mxu0 0.0
        %1741 = vmatpush2.msra.mxu0 0.0
        %1742 = vmatprep.subr.mxu0 0.0
        %1743 = vmatpush2.msra.mxu0 0.0
        %1744 = vmatprep.subr.mxu0 0.0
        %1745 = vmatpush2.msra.mxu0 0.0
        %1746 = vmatprep.subr.mxu0 0.0
        %1747 = vmatpush2.msra.mxu0 0.0
        %1748 = vmatprep.subr.mxu0 0.0
        %1749 = vmatpush2.msra.mxu0 0.0
        %1750 = vmatprep.subr.mxu0 0.0
        %1751 = vmatpush2.msra.mxu0 0.0
        %1752 = vmatprep.subr.mxu0 0.0
        %1753 = vmatpush2.msra.mxu0 0.0
        %1754 = vmatprep.subr.mxu0 0.0
        %1755 = vmatpush2.msra.mxu0 0.0
        %1756 = vmatprep.mubr.f32.mxu0 0.0
        %1757 = vmatmul.mubr.f32.gmra.mxu0 %v1690
        %v1758 = vpop.f32.mrf.mxu0
        %v1759 = vadd.f32 0.0, %v1758
        %v1760 = vpop.f32.mrf.mxu0
        %1761 = vdwg.mxu0
        %v1763 = vsel %vm1571, %v1614, 0
        %1765 = vmatprep.subr.mxu0 0.0
        %1766 = vmatpush1.msra.mxu0 0.0
        %1767 = vmatprep.subr.mxu0 0.0
        %1768 = vmatpush1.msra.mxu0 0.0
        %1769 = vmatprep.subr.mxu0 0.0
        %1770 = vmatpush1.msra.mxu0 0.0
        %1771 = vmatprep.subr.mxu0 0.0
        %1772 = vmatpush1.msra.mxu0 0.0
        %1773 = vmatprep.subr.mxu0 0.0
        %1774 = vmatpush1.msra.mxu0 0.0
        %1775 = vmatprep.subr.mxu0 0.0
        %1776 = vmatpush1.msra.mxu0 0.0
        %1777 = vmatprep.subr.mxu0 0.0
        %1778 = vmatpush1.msra.mxu0 0.0
        %1779 = vmatprep.subr.mxu0 0.0
        %1780 = vmatpush1.msra.mxu0 0.0
        %1781 = vmatprep.subr.mxu0 0.0
        %1782 = vmatpush1.msra.mxu0 0.0
        %1783 = vmatprep.subr.mxu0 0.0
        %1784 = vmatpush1.msra.mxu0 0.0
        %1785 = vmatprep.subr.mxu0 0.0
        %1786 = vmatpush1.msra.mxu0 0.0
        %1787 = vmatprep.subr.mxu0 0.0
        %1788 = vmatpush1.msra.mxu0 0.0
        %1789 = vmatprep.subr.mxu0 0.0
        %1790 = vmatpush1.msra.mxu0 0.0
        %1791 = vmatprep.subr.mxu0 0.0
        %1792 = vmatpush1.msra.mxu0 0.0
        %1793 = vmatprep.subr.mxu0 0.0
        %1794 = vmatpush1.msra.mxu0 0.0
        %1795 = vmatprep.subr.mxu0 0.0
        %1796 = vmatpush1.msra.mxu0 %v1264
        %1797 = vmatprep.subr.mxu0 0.0
        %1798 = vmatpush2.msra.mxu0 0.0
        %1799 = vmatprep.subr.mxu0 0.0
        %1800 = vmatpush2.msra.mxu0 0.0
        %1801 = vmatprep.subr.mxu0 0.0
        %1802 = vmatpush2.msra.mxu0 0.0
        %1803 = vmatprep.subr.mxu0 0.0
        %1804 = vmatpush2.msra.mxu0 0.0
        %1805 = vmatprep.subr.mxu0 0.0
        %1806 = vmatpush2.msra.mxu0 0.0
        %1807 = vmatprep.subr.mxu0 0.0
        %1808 = vmatpush2.msra.mxu0 0.0
        %1809 = vmatprep.subr.mxu0 0.0
        %1810 = vmatpush2.msra.mxu0 0.0
        %1811 = vmatprep.subr.mxu0 0.0
        %1812 = vmatpush2.msra.mxu0 0.0
        %1813 = vmatprep.subr.mxu0 0.0
        %1814 = vmatpush2.msra.mxu0 0.0
        %1815 = vmatprep.subr.mxu0 0.0
        %1816 = vmatpush2.msra.mxu0 0.0
        %1817 = vmatprep.subr.mxu0 0.0
        %1818 = vmatpush2.msra.mxu0 0.0
        %1819 = vmatprep.subr.mxu0 0.0
        %1820 = vmatpush2.msra.mxu0 0.0
        %1821 = vmatprep.subr.mxu0 0.0
        %1822 = vmatpush2.msra.mxu0 0.0
        %1823 = vmatprep.subr.mxu0 0.0
        %1824 = vmatpush2.msra.mxu0 0.0
        %1825 = vmatprep.subr.mxu0 0.0
        %1826 = vmatpush2.msra.mxu0 0.0
        %1827 = vmatprep.subr.mxu0 0.0
        %1828 = vmatpush2.msra.mxu0 0.0
        %1829 = vmatprep.mubr.f32.mxu0 0.0
        %1830 = vmatmul.mubr.f32.gmra.mxu0 %v1763
        %v1831 = vpop.f32.mrf.mxu0
        %v1832 = vadd.f32 0.0, %v1831
        %v1833 = vpop.f32.mrf.mxu0
        %1834 = vdwg.mxu0
        %v1836 = vsel %vm1571, %v1615, 0
        %1838 = vmatprep.subr.mxu0 0.0
        %1839 = vmatpush1.msra.mxu0 0.0
        %1840 = vmatprep.subr.mxu0 0.0
        %1841 = vmatpush1.msra.mxu0 0.0
        %1842 = vmatprep.subr.mxu0 0.0
        %1843 = vmatpush1.msra.mxu0 0.0
        %1844 = vmatprep.subr.mxu0 0.0
        %1845 = vmatpush1.msra.mxu0 0.0
        %1846 = vmatprep.subr.mxu0 0.0
        %1847 = vmatpush1.msra.mxu0 0.0
        %1848 = vmatprep.subr.mxu0 0.0
        %1849 = vmatpush1.msra.mxu0 0.0
        %1850 = vmatprep.subr.mxu0 0.0
        %1851 = vmatpush1.msra.mxu0 0.0
        %1852 = vmatprep.subr.mxu0 0.0
        %1853 = vmatpush1.msra.mxu0 0.0
        %1854 = vmatprep.subr.mxu0 0.0
        %1855 = vmatpush1.msra.mxu0 0.0
        %1856 = vmatprep.subr.mxu0 0.0
        %1857 = vmatpush1.msra.mxu0 0.0
        %1858 = vmatprep.subr.mxu0 0.0
        %1859 = vmatpush1.msra.mxu0 0.0
        %1860 = vmatprep.subr.mxu0 0.0
        %1861 = vmatpush1.msra.mxu0 0.0
        %1862 = vmatprep.subr.mxu0 0.0
        %1863 = vmatpush1.msra.mxu0 0.0
        %1864 = vmatprep.subr.mxu0 0.0
        %1865 = vmatpush1.msra.mxu0 0.0
        %1866 = vmatprep.subr.mxu0 0.0
        %1867 = vmatpush1.msra.mxu0 0.0
        %1868 = vmatprep.subr.mxu0 0.0
        %1869 = vmatpush1.msra.mxu0 %v1265
        %1870 = vmatprep.subr.mxu0 0.0
        %1871 = vmatpush2.msra.mxu0 0.0
        %1872 = vmatprep.subr.mxu0 0.0
        %1873 = vmatpush2.msra.mxu0 0.0
        %1874 = vmatprep.subr.mxu0 0.0
        %1875 = vmatpush2.msra.mxu0 0.0
        %1876 = vmatprep.subr.mxu0 0.0
        %1877 = vmatpush2.msra.mxu0 0.0
        %1878 = vmatprep.subr.mxu0 0.0
        %1879 = vmatpush2.msra.mxu0 0.0
        %1880 = vmatprep.subr.mxu0 0.0
        %1881 = vmatpush2.msra.mxu0 0.0
        %1882 = vmatprep.subr.mxu0 0.0
        %1883 = vmatpush2.msra.mxu0 0.0
        %1884 = vmatprep.subr.mxu0 0.0
        %1885 = vmatpush2.msra.mxu0 0.0
        %1886 = vmatprep.subr.mxu0 0.0
        %1887 = vmatpush2.msra.mxu0 0.0
        %1888 = vmatprep.subr.mxu0 0.0
        %1889 = vmatpush2.msra.mxu0 0.0
        %1890 = vmatprep.subr.mxu0 0.0
        %1891 = vmatpush2.msra.mxu0 0.0
        %1892 = vmatprep.subr.mxu0 0.0
        %1893 = vmatpush2.msra.mxu0 0.0
        %1894 = vmatprep.subr.mxu0 0.0
        %1895 = vmatpush2.msra.mxu0 0.0
        %1896 = vmatprep.subr.mxu0 0.0
        %1897 = vmatpush2.msra.mxu0 0.0
        %1898 = vmatprep.subr.mxu0 0.0
        %1899 = vmatpush2.msra.mxu0 0.0
        %1900 = vmatprep.subr.mxu0 0.0
        %1901 = vmatpush2.msra.mxu0 0.0
        %1902 = vmatprep.mubr.f32.mxu0 0.0
        %1903 = vmatmul.mubr.f32.gmra.mxu0 %v1836
        %v1904 = vpop.f32.mrf.mxu0
        %v1905 = vadd.f32 0.0, %v1904
        %v1906 = vpop.f32.mrf.mxu0
        %1907 = vdwg.mxu0
        %v1908 = vcombine.low %v1686, %v1832
        %v1909 = vcombine.high %v1686, %v1832
        %v1911 = vunpack.c.l.s4 1983009808
        %v1912 = vunpack.c.0.s8 %v1911
        %v1913 = vlaneseq
        %v1914 = vshrl.u32 %v1913, 7
        %v1915 = vsub.s32 %v1912, %v1914
        %v1916 = vrot.slane %v1908, %v1915
        %v1918 = vunpack.c.l.s4 1983009808
        %v1919 = vunpack.c.0.s8 %v1918
        %v1920 = vlaneseq
        %v1921 = vshrl.u32 %v1920, 7
        %v1922 = vsub.s32 %v1919, %v1921
        %v1923 = vrot.slane %v1909, %v1922
        %v1924 = vcombine.low %v1759, %v1905
        %v1925 = vcombine.high %v1759, %v1905
        %v1927 = vunpack.c.l.s4 1983009808
        %v1928 = vunpack.c.0.s8 %v1927
        %v1929 = vlaneseq
        %v1930 = vshrl.u32 %v1929, 7
        %v1931 = vsub.s32 %v1928, %v1930
        %v1932 = vrot.slane %v1924, %v1931
        %v1934 = vunpack.c.l.s4 1983009808
        %v1935 = vunpack.c.0.s8 %v1934
        %v1936 = vlaneseq
        %v1937 = vshrl.u32 %v1936, 7
        %v1938 = vsub.s32 %v1935, %v1937
        %v1939 = vrot.slane %v1925, %v1938
        %v1940 = vcombine.low %v1916, %v1932
        %v1941 = vcombine.high %v1916, %v1932
        %v1943 = vunpack.c.l.s4 1934713408
        %v1944 = vunpack.c.0.s8 %v1943
        %v1945 = vlaneseq
        %v1946 = vshrl.u32 %v1945, 7
        %v1947 = vsub.s32 %v1944, %v1946
        %v1948 = vrot.slane %v1940, %v1947
        %v1950 = vunpack.c.l.s4 1934713408
        %v1951 = vunpack.c.0.s8 %v1950
        %v1952 = vlaneseq
        %v1953 = vshrl.u32 %v1952, 7
        %v1954 = vsub.s32 %v1951, %v1953
        %v1955 = vrot.slane %v1941, %v1954
        %v1956 = vcombine.low %v1923, %v1939
        %v1957 = vcombine.high %v1923, %v1939
        %v1959 = vunpack.c.l.s4 1934713408
        %v1960 = vunpack.c.0.s8 %v1959
        %v1961 = vlaneseq
        %v1962 = vshrl.u32 %v1961, 7
        %v1963 = vsub.s32 %v1960, %v1962
        %v1964 = vrot.slane %v1956, %v1963
        %v1966 = vunpack.c.l.s4 1934713408
        %v1967 = vunpack.c.0.s8 %v1966
        %v1968 = vlaneseq
        %v1969 = vshrl.u32 %v1968, 7
        %v1970 = vsub.s32 %v1967, %v1969
        %v1971 = vrot.slane %v1957, %v1970
        %v1972 = vcombine.high %v1948, 0.0
        %v1973 = vcombine.high %v1955, 0.0
        %v1974 = vcombine.high %v1964, 0.0
        %v1975 = vcombine.high %v1971, 0.0
        %v1976 = vcombine.low %v1948, %v1955
        %v1978 = vunpack.c.l.s4 1983009808
        %v1979 = vunpack.c.0.s8 %v1978
        %v1980 = vlaneseq
        %v1981 = vshrl.u32 %v1980, 7
        %v1982 = vsub.s32 %v1979, %v1981
        %v1983 = vrot.slane %v1976, %v1982
        %v1984 = vcombine.low %v1972, %v1973
        %v1986 = vunpack.c.l.s4 1983009808
        %v1987 = vunpack.c.0.s8 %v1986
        %v1988 = vlaneseq
        %v1989 = vshrl.u32 %v1988, 7
        %v1990 = vsub.s32 %v1987, %v1989
        %v1991 = vrot.slane %v1984, %v1990
        %v1992 = vcombine.low %v1964, %v1971
        %v1994 = vunpack.c.l.s4 1983009808
        %v1995 = vunpack.c.0.s8 %v1994
        %v1996 = vlaneseq
        %v1997 = vshrl.u32 %v1996, 7
        %v1998 = vsub.s32 %v1995, %v1997
        %v1999 = vrot.slane %v1992, %v1998
        %v2000 = vcombine.low %v1974, %v1975
        %v2002 = vunpack.c.l.s4 1983009808
        %v2003 = vunpack.c.0.s8 %v2002
        %v2004 = vlaneseq
        %v2005 = vshrl.u32 %v2004, 7
        %v2006 = vsub.s32 %v2003, %v2005
        %v2007 = vrot.slane %v2000, %v2006
        %v2008 = vcombine.low %v1983, %v1991
        %v2009 = vcombine.high %v1983, %v1991
        %v2011 = vunpack.c.l.s4 1934713408
        %v2012 = vunpack.c.0.s8 %v2011
        %v2013 = vlaneseq
        %v2014 = vshrl.u32 %v2013, 7
        %v2015 = vsub.s32 %v2012, %v2014
        %v2016 = vrot.slane %v2008, %v2015
        %v2018 = vunpack.c.l.s4 1934713408
        %v2019 = vunpack.c.0.s8 %v2018
        %v2020 = vlaneseq
        %v2021 = vshrl.u32 %v2020, 7
        %v2022 = vsub.s32 %v2019, %v2021
        %v2023 = vrot.slane %v2009, %v2022
        %v2024 = vcombine.low %v1999, %v2007
        %v2025 = vcombine.high %v1999, %v2007
        %v2027 = vunpack.c.l.s4 1934713408
        %v2028 = vunpack.c.0.s8 %v2027
        %v2029 = vlaneseq
        %v2030 = vshrl.u32 %v2029, 7
        %v2031 = vsub.s32 %v2028, %v2030
        %v2032 = vrot.slane %v2024, %v2031
        %v2034 = vunpack.c.l.s4 1934713408
        %v2035 = vunpack.c.0.s8 %v2034
        %v2036 = vlaneseq
        %v2037 = vshrl.u32 %v2036, 7
        %v2038 = vsub.s32 %v2035, %v2037
        %v2039 = vrot.slane %v2025, %v2038
        %v2040 = vcombine.low %v2016, %v2032
        %v2041 = vcombine.high %v2016, %v2032
        %v2042 = vcombine.low %v2023, %v2039
        %v2043 = vcombine.high %v2023, %v2039
        %2045 = vrot.lane.b32.xlu0 %v2041, 32
        %v2046 = vpop.permute.xlu0 %2045
        %2049 = vrot.lane.b32.xlu0 %v2042, 64
        %v2050 = vpop.permute.xlu0 %2049
        %2053 = vrot.lane.b32.xlu0 %v2043, 96
        %v2054 = vpop.permute.xlu0 %2053
        %v2056 = vsel %vm1266, %v2040, %v2046
        %vm2057 = vcmask 523264
        %v2058 = vsel %vm2057, %v2056, %v2050
        %vm2059 = vcmask 785408
        %v2060 = vsel %vm2059, %v2058, %v2054
        %v2061 = vpack.c.bf16 %v2060, %v2060
        %v2062 = vld [vmem:[#allocation10] sm:$0xf]
        %v2063 = vld [vmem:[#allocation10 + $0x4] sm:$0xf]
        %v2064 = vld [vmem:[#allocation10 + $0x8] sm:$0xf]
        %v2065 = vld [vmem:[#allocation10 + $0xc] sm:$0xf]
        %v2066 = vld [vmem:[#allocation10 + $0x10] sm:$0xf]
        %v2067 = vld [vmem:[#allocation10 + $0x14] sm:$0xf]
        %v2068 = vld [vmem:[#allocation10 + $0x18] sm:$0xf]
        %v2069 = vld [vmem:[#allocation10 + $0x1c] sm:$0xf]
        %v2070 = vld [vmem:[#allocation10 + $0x20] sm:$0xf]
        %v2071 = vld [vmem:[#allocation10 + $0x24] sm:$0xf]
        %v2072 = vld [vmem:[#allocation10 + $0x28] sm:$0xf]
        %v2073 = vld [vmem:[#allocation10 + $0x2c] sm:$0xf]
        %v2074 = vld [vmem:[#allocation10 + $0x30] sm:$0xf]
        %v2075 = vld [vmem:[#allocation10 + $0x34] sm:$0xf]
        %v2076 = vld [vmem:[#allocation10 + $0x38] sm:$0xf]
        %v2077 = vld [vmem:[#allocation10 + $0x3c] sm:$0xf]
        %v2078 = vld [vmem:[%s6] sm:$0x1]
        %v2080 = vlaneseq
        %v2081 = vshrl.u32 %v2080, 7
        %v2082 = vsub.s32 0, %v2081
        %v2083 = vrot.slane %v2078, %v2082
        %v2101 = vunpack.c.l.b16 %v2062
        %v2102 = vunpack.c.l.b16 %v2063
        %v2103 = vunpack.c.l.b16 %v2064
        %v2104 = vunpack.c.l.b16 %v2065
        %v2105 = vunpack.c.l.b16 %v2066
        %v2106 = vunpack.c.l.b16 %v2067
        %v2107 = vunpack.c.l.b16 %v2068
        %v2108 = vunpack.c.l.b16 %v2069
        %v2109 = vunpack.c.l.b16 %v2070
        %v2110 = vunpack.c.l.b16 %v2071
        %v2111 = vunpack.c.l.b16 %v2072
        %v2112 = vunpack.c.l.b16 %v2073
        %v2113 = vunpack.c.l.b16 %v2074
        %v2114 = vunpack.c.l.b16 %v2075
        %v2115 = vunpack.c.l.b16 %v2076
        %v2116 = vunpack.c.l.b16 %v2077
        %v2117 = vpack.c.b16 %v2102, %v2101
        %v2118 = vpack.c.b16 %v2104, %v2103
        %v2119 = vpack.c.b16 %v2106, %v2105
        %v2120 = vpack.c.b16 %v2108, %v2107
        %v2121 = vpack.c.b16 %v2110, %v2109
        %v2122 = vpack.c.b16 %v2112, %v2111
        %v2123 = vpack.c.b16 %v2114, %v2113
        %v2124 = vpack.c.b16 %v2116, %v2115
        %2133 = vmatprep.subr.bf16.mxu0 0
        %2134 = vmatpush1.bf16.msra.mxu0 %v2124
        %2135 = vmatprep.subr.bf16.mxu0 0
        %2136 = vmatpush1.bf16.msra.mxu0 %v2123
        %2137 = vmatprep.subr.bf16.mxu0 0
        %2138 = vmatpush1.bf16.msra.mxu0 %v2122
        %2139 = vmatprep.subr.bf16.mxu0 0
        %2140 = vmatpush1.bf16.msra.mxu0 %v2121
        %2141 = vmatprep.subr.bf16.mxu0 0
        %2142 = vmatpush1.bf16.msra.mxu0 %v2120
        %2143 = vmatprep.subr.bf16.mxu0 0
        %2144 = vmatpush1.bf16.msra.mxu0 %v2119
        %2145 = vmatprep.subr.bf16.mxu0 0
        %2146 = vmatpush1.bf16.msra.mxu0 %v2118
        %2147 = vmatprep.subr.bf16.mxu0 0
        %2148 = vmatpush1.bf16.msra.mxu0 %v2117
        %2149 = vmatprep.subr.bf16.mxu0 0
        %2150 = vmatpush2.bf16.msra.mxu0 0
        %2151 = vmatprep.subr.bf16.mxu0 0
        %2152 = vmatpush2.bf16.msra.mxu0 0
        %2153 = vmatprep.subr.bf16.mxu0 0
        %2154 = vmatpush2.bf16.msra.mxu0 0
        %2155 = vmatprep.subr.bf16.mxu0 0
        %2156 = vmatpush2.bf16.msra.mxu0 0
        %2157 = vmatprep.subr.bf16.mxu0 0
        %2158 = vmatpush2.bf16.msra.mxu0 0
        %2159 = vmatprep.subr.bf16.mxu0 0
        %2160 = vmatpush2.bf16.msra.mxu0 0
        %2161 = vmatprep.subr.bf16.mxu0 0
        %2162 = vmatpush2.bf16.msra.mxu0 0
        %2163 = vmatprep.subr.bf16.mxu0 0
        %2164 = vmatpush2.bf16.msra.mxu0 0
        %2165 = vmatprep.mubr.bf16.mxu0 0
        %2166 = vmatmul.mubr.bf16.gmra.mxu0 %v2061
        %v2167 = vpop.f32.mrf.mxu0
        %v2168 = vadd.f32 %v2083, %v2167
        %v2169 = vpop.f32.mrf.mxu0
        %v2170 = vpop.f32.mrf.mxu0
        %v2171 = vpop.f32.mrf.mxu0
        %2172 = vdwg.mxu0
        %v2173 = vadd.f32 %v540, %v2168
        %v2174 = vld [vmem:[%s7] sm:$0x1]
        %v2175 = vld [vmem:[%s8] sm:$0x1]
        %2176 = vadd.xlane.f32.xlu0 %v2173
        %v2177 = vpop.xlane.xlu0 %2176
        %v2178 = vmul.f32 %v2177, %v545
        %v2179 = vsub.f32 %v2173, %v2178
        %v2180 = vmul.f32 %v2179, %v2179
        %2181 = vadd.xlane.f32.xlu0 %v2180
        %v2182 = vpop.xlane.xlu0 %2181
        %v2183 = vmul.f32 %v2182, %v545
        %v2184 = vadd.f32 %v2183, 1e-05
        %v2185 = vrsqrt.pop %v2184
        %v2186 = vmul.f32 %v2179, %v2185
        %v2188 = vlaneseq
        %v2189 = vshrl.u32 %v2188, 7
        %v2190 = vsub.s32 0, %v2189
        %v2191 = vrot.slane %v2174, %v2190
        %v2193 = vmul.f32 %v2186, %v2191
        %v2195 = vlaneseq
        %v2196 = vshrl.u32 %v2195, 7
        %v2197 = vsub.s32 0, %v2196
        %v2198 = vrot.slane %v2175, %v2197
        %v2200 = vadd.f32 %v2193, %v2198
        %v2201 = vpack.c.bf16 %v2200, %v2200
        %v2202 = vld [vmem:[#allocation11] sm:$0xff]
        %v2203 = vld [vmem:[#allocation11 + $0x8] sm:$0xff]
        %v2204 = vld [vmem:[#allocation11 + $0x10] sm:$0xff]
        %v2205 = vld [vmem:[#allocation11 + $0x18] sm:$0xff]
        %v2206 = vld [vmem:[#allocation11 + $0x20] sm:$0xff]
        %v2207 = vld [vmem:[#allocation11 + $0x28] sm:$0xff]
        %v2208 = vld [vmem:[#allocation11 + $0x30] sm:$0xff]
        %v2209 = vld [vmem:[#allocation11 + $0x38] sm:$0xff]
        %v2210 = vld [vmem:[#allocation11 + $0x40] sm:$0xff]
        %v2211 = vld [vmem:[#allocation11 + $0x48] sm:$0xff]
        %v2212 = vld [vmem:[#allocation11 + $0x50] sm:$0xff]
        %v2213 = vld [vmem:[#allocation11 + $0x58] sm:$0xff]
        %v2214 = vld [vmem:[#allocation11 + $0x60] sm:$0xff]
        %v2215 = vld [vmem:[#allocation11 + $0x68] sm:$0xff]
        %v2216 = vld [vmem:[#allocation11 + $0x70] sm:$0xff]
        %v2217 = vld [vmem:[#allocation11 + $0x78] sm:$0xff]
        %v2218 = vld [vmem:[%s10] sm:$0x3]
        %v2220 = vlaneseq
        %v2221 = vshrl.u32 %v2220, 7
        %v2222 = vsub.s32 0, %v2221
        %v2223 = vrot.slane %v2218, %v2222
        %v2224 = vlaneseq
        %v2225 = vshrl.u32 %v2224, 7
        %v2226 = vsub.s32 1, %v2225
        %v2227 = vrot.slane %v2218, %v2226
        %v2246 = vunpack.c.l.b16 %v2202
        %v2247 = vunpack.c.h.b16 %v2202
        %v2248 = vunpack.c.l.b16 %v2203
        %v2249 = vunpack.c.h.b16 %v2203
        %v2250 = vunpack.c.l.b16 %v2204
        %v2251 = vunpack.c.h.b16 %v2204
        %v2252 = vunpack.c.l.b16 %v2205
        %v2253 = vunpack.c.h.b16 %v2205
        %v2254 = vunpack.c.l.b16 %v2206
        %v2255 = vunpack.c.h.b16 %v2206
        %v2256 = vunpack.c.l.b16 %v2207
        %v2257 = vunpack.c.h.b16 %v2207
        %v2258 = vunpack.c.l.b16 %v2208
        %v2259 = vunpack.c.h.b16 %v2208
        %v2260 = vunpack.c.l.b16 %v2209
        %v2261 = vunpack.c.h.b16 %v2209
        %v2262 = vunpack.c.l.b16 %v2210
        %v2263 = vunpack.c.h.b16 %v2210
        %v2264 = vunpack.c.l.b16 %v2211
        %v2265 = vunpack.c.h.b16 %v2211
        %v2266 = vunpack.c.l.b16 %v2212
        %v2267 = vunpack.c.h.b16 %v2212
        %v2268 = vunpack.c.l.b16 %v2213
        %v2269 = vunpack.c.h.b16 %v2213
        %v2270 = vunpack.c.l.b16 %v2214
        %v2271 = vunpack.c.h.b16 %v2214
        %v2272 = vunpack.c.l.b16 %v2215
        %v2273 = vunpack.c.h.b16 %v2215
        %v2274 = vunpack.c.l.b16 %v2216
        %v2275 = vunpack.c.h.b16 %v2216
        %v2276 = vunpack.c.l.b16 %v2217
        %v2277 = vunpack.c.h.b16 %v2217
        %v2278 = vpack.c.b16 %v2248, %v2246
        %v2279 = vpack.c.b16 %v2249, %v2247
        %v2280 = vpack.c.b16 %v2252, %v2250
        %v2281 = vpack.c.b16 %v2253, %v2251
        %v2282 = vpack.c.b16 %v2256, %v2254
        %v2283 = vpack.c.b16 %v2257, %v2255
        %v2284 = vpack.c.b16 %v2260, %v2258
        %v2285 = vpack.c.b16 %v2261, %v2259
        %v2286 = vpack.c.b16 %v2264, %v2262
        %v2287 = vpack.c.b16 %v2265, %v2263
        %v2288 = vpack.c.b16 %v2268, %v2266
        %v2289 = vpack.c.b16 %v2269, %v2267
        %v2290 = vpack.c.b16 %v2272, %v2270
        %v2291 = vpack.c.b16 %v2273, %v2271
        %v2292 = vpack.c.b16 %v2276, %v2274
        %v2293 = vpack.c.b16 %v2277, %v2275
        %2310 = vmatprep.subr.bf16.mxu0 %v2293
        %2311 = vmatpush1.bf16.msra.mxu0 %v2292
        %2312 = vmatprep.subr.bf16.mxu0 %v2291
        %2313 = vmatpush1.bf16.msra.mxu0 %v2290
        %2314 = vmatprep.subr.bf16.mxu0 %v2289
        %2315 = vmatpush1.bf16.msra.mxu0 %v2288
        %2316 = vmatprep.subr.bf16.mxu0 %v2287
        %2317 = vmatpush1.bf16.msra.mxu0 %v2286
        %2318 = vmatprep.subr.bf16.mxu0 %v2285
        %2319 = vmatpush1.bf16.msra.mxu0 %v2284
        %2320 = vmatprep.subr.bf16.mxu0 %v2283
        %2321 = vmatpush1.bf16.msra.mxu0 %v2282
        %2322 = vmatprep.subr.bf16.mxu0 %v2281
        %2323 = vmatpush1.bf16.msra.mxu0 %v2280
        %2324 = vmatprep.subr.bf16.mxu0 %v2279
        %2325 = vmatpush1.bf16.msra.mxu0 %v2278
        %2326 = vmatprep.subr.bf16.mxu0 0
        %2327 = vmatpush2.bf16.msra.mxu0 0
        %2328 = vmatprep.subr.bf16.mxu0 0
        %2329 = vmatpush2.bf16.msra.mxu0 0
        %2330 = vmatprep.subr.bf16.mxu0 0
        %2331 = vmatpush2.bf16.msra.mxu0 0
        %2332 = vmatprep.subr.bf16.mxu0 0
        %2333 = vmatpush2.bf16.msra.mxu0 0
        %2334 = vmatprep.subr.bf16.mxu0 0
        %2335 = vmatpush2.bf16.msra.mxu0 0
        %2336 = vmatprep.subr.bf16.mxu0 0
        %2337 = vmatpush2.bf16.msra.mxu0 0
        %2338 = vmatprep.subr.bf16.mxu0 0
        %2339 = vmatpush2.bf16.msra.mxu0 0
        %2340 = vmatprep.subr.bf16.mxu0 0
        %2341 = vmatpush2.bf16.msra.mxu0 0
        %2342 = vmatprep.mubr.bf16.mxu0 0
        %2343 = vmatmul.mubr.bf16.gmra.mxu0 %v2201
        %v2344 = vpop.f32.mrf.mxu0
        %v2345 = vadd.f32 %v2223, %v2344
        %v2346 = vpop.f32.mrf.mxu0
        %v2347 = vadd.f32 %v2227, %v2346
        %v2348 = vpop.f32.mrf.mxu0
        %v2349 = vpop.f32.mrf.mxu0
        %2350 = vdwg.mxu0
        %v2351 = vmul.f32 %v2345, %v2345
        %v2352 = vmul.f32 %v2347, %v2347
        %v2353 = vmul.f32 %v2345, %v2351
        %v2354 = vmul.f32 %v2347, %v2352
        %v2355 = vmul.f32 %v2353, 0.044715
        %v2356 = vmul.f32 %v2354, 0.044715
        %v2357 = vadd.f32 %v2345, %v2355
        %v2358 = vadd.f32 %v2347, %v2356
        %v2359 = vmul.f32 %v2357, 0.7978846
        %v2360 = vmul.f32 %v2358, 0.7978846
        %v2361 = vtanh.pop %v2359
        %v2362 = vtanh.pop %v2360
        %v2363 = vadd.f32 %v2361, 1.0
        %v2364 = vadd.f32 %v2362, 1.0
        %v2365 = vmul.f32 %v2363, 0.5
        %v2366 = vmul.f32 %v2364, 0.5
        %v2367 = vmul.f32 %v2345, %v2365
        %v2368 = vmul.f32 %v2347, %v2366
        %v2369 = vpack.c.bf16 %v2367, %v2367
        %v2370 = vpack.c.bf16 %v2368, %v2368
        %v2371 = vld [vmem:[#allocation13] sm:$0xf]
        %v2372 = vld [vmem:[#allocation13 + $0x4] sm:$0xf]
        %v2373 = vld [vmem:[#allocation13 + $0x8] sm:$0xf]
        %v2374 = vld [vmem:[#allocation13 + $0xc] sm:$0xf]
        %v2375 = vld [vmem:[#allocation13 + $0x10] sm:$0xf]
        %v2376 = vld [vmem:[#allocation13 + $0x14] sm:$0xf]
        %v2377 = vld [vmem:[#allocation13 + $0x18] sm:$0xf]
        %v2378 = vld [vmem:[#allocation13 + $0x1c] sm:$0xf]
        %v2379 = vld [vmem:[#allocation13 + $0x20] sm:$0xf]
        %v2380 = vld [vmem:[#allocation13 + $0x24] sm:$0xf]
        %v2381 = vld [vmem:[#allocation13 + $0x28] sm:$0xf]
        %v2382 = vld [vmem:[#allocation13 + $0x2c] sm:$0xf]
        %v2383 = vld [vmem:[#allocation13 + $0x30] sm:$0xf]
        %v2384 = vld [vmem:[#allocation13 + $0x34] sm:$0xf]
        %v2385 = vld [vmem:[#allocation13 + $0x38] sm:$0xf]
        %v2386 = vld [vmem:[#allocation13 + $0x3c] sm:$0xf]
        %v2387 = vld [vmem:[#allocation13 + $0x40] sm:$0xf]
        %v2388 = vld [vmem:[#allocation13 + $0x44] sm:$0xf]
        %v2389 = vld [vmem:[#allocation13 + $0x48] sm:$0xf]
        %v2390 = vld [vmem:[#allocation13 + $0x4c] sm:$0xf]
        %v2391 = vld [vmem:[#allocation13 + $0x50] sm:$0xf]
        %v2392 = vld [vmem:[#allocation13 + $0x54] sm:$0xf]
        %v2393 = vld [vmem:[#allocation13 + $0x58] sm:$0xf]
        %v2394 = vld [vmem:[#allocation13 + $0x5c] sm:$0xf]
        %v2395 = vld [vmem:[#allocation13 + $0x60] sm:$0xf]
        %v2396 = vld [vmem:[#allocation13 + $0x64] sm:$0xf]
        %v2397 = vld [vmem:[#allocation13 + $0x68] sm:$0xf]
        %v2398 = vld [vmem:[#allocation13 + $0x6c] sm:$0xf]
        %v2399 = vld [vmem:[#allocation13 + $0x70] sm:$0xf]
        %v2400 = vld [vmem:[#allocation13 + $0x74] sm:$0xf]
        %v2401 = vld [vmem:[#allocation13 + $0x78] sm:$0xf]
        %v2402 = vld [vmem:[#allocation13 + $0x7c] sm:$0xf]
        %v2403 = vld [vmem:[%s12] sm:$0x1]
        %v2405 = vlaneseq
        %v2406 = vshrl.u32 %v2405, 7
        %v2407 = vsub.s32 0, %v2406
        %v2408 = vrot.slane %v2403, %v2407
        %v2442 = vunpack.c.l.b16 %v2371
        %v2443 = vunpack.c.l.b16 %v2372
        %v2444 = vunpack.c.l.b16 %v2373
        %v2445 = vunpack.c.l.b16 %v2374
        %v2446 = vunpack.c.l.b16 %v2375
        %v2447 = vunpack.c.l.b16 %v2376
        %v2448 = vunpack.c.l.b16 %v2377
        %v2449 = vunpack.c.l.b16 %v2378
        %v2450 = vunpack.c.l.b16 %v2379
        %v2451 = vunpack.c.l.b16 %v2380
        %v2452 = vunpack.c.l.b16 %v2381
        %v2453 = vunpack.c.l.b16 %v2382
        %v2454 = vunpack.c.l.b16 %v2383
        %v2455 = vunpack.c.l.b16 %v2384
        %v2456 = vunpack.c.l.b16 %v2385
        %v2457 = vunpack.c.l.b16 %v2386
        %v2458 = vunpack.c.l.b16 %v2387
        %v2459 = vunpack.c.l.b16 %v2388
        %v2460 = vunpack.c.l.b16 %v2389
        %v2461 = vunpack.c.l.b16 %v2390
        %v2462 = vunpack.c.l.b16 %v2391
        %v2463 = vunpack.c.l.b16 %v2392
        %v2464 = vunpack.c.l.b16 %v2393
        %v2465 = vunpack.c.l.b16 %v2394
        %v2466 = vunpack.c.l.b16 %v2395
        %v2467 = vunpack.c.l.b16 %v2396
        %v2468 = vunpack.c.l.b16 %v2397
        %v2469 = vunpack.c.l.b16 %v2398
        %v2470 = vunpack.c.l.b16 %v2399
        %v2471 = vunpack.c.l.b16 %v2400
        %v2472 = vunpack.c.l.b16 %v2401
        %v2473 = vunpack.c.l.b16 %v2402
        %v2474 = vpack.c.b16 %v2443, %v2442
        %v2475 = vpack.c.b16 %v2445, %v2444
        %v2476 = vpack.c.b16 %v2447, %v2446
        %v2477 = vpack.c.b16 %v2449, %v2448
        %v2478 = vpack.c.b16 %v2451, %v2450
        %v2479 = vpack.c.b16 %v2453, %v2452
        %v2480 = vpack.c.b16 %v2455, %v2454
        %v2481 = vpack.c.b16 %v2457, %v2456
        %v2482 = vpack.c.b16 %v2459, %v2458
        %v2483 = vpack.c.b16 %v2461, %v2460
        %v2484 = vpack.c.b16 %v2463, %v2462
        %v2485 = vpack.c.b16 %v2465, %v2464
        %v2486 = vpack.c.b16 %v2467, %v2466
        %v2487 = vpack.c.b16 %v2469, %v2468
        %v2488 = vpack.c.b16 %v2471, %v2470
        %v2489 = vpack.c.b16 %v2473, %v2472
        %2506 = vmatprep.subr.bf16.mxu0 0
        %2507 = vmatpush1.bf16.msra.mxu0 %v2481
        %2508 = vmatprep.subr.bf16.mxu0 0
        %2509 = vmatpush1.bf16.msra.mxu0 %v2480
        %2510 = vmatprep.subr.bf16.mxu0 0
        %2511 = vmatpush1.bf16.msra.mxu0 %v2479
        %2512 = vmatprep.subr.bf16.mxu0 0
        %2513 = vmatpush1.bf16.msra.mxu0 %v2478
        %2514 = vmatprep.subr.bf16.mxu0 0
        %2515 = vmatpush1.bf16.msra.mxu0 %v2477
        %2516 = vmatprep.subr.bf16.mxu0 0
        %2517 = vmatpush1.bf16.msra.mxu0 %v2476
        %2518 = vmatprep.subr.bf16.mxu0 0
        %2519 = vmatpush1.bf16.msra.mxu0 %v2475
        %2520 = vmatprep.subr.bf16.mxu0 0
        %2521 = vmatpush1.bf16.msra.mxu0 %v2474
        %2522 = vmatprep.subr.bf16.mxu0 0
        %2523 = vmatpush2.bf16.msra.mxu0 %v2489
        %2524 = vmatprep.subr.bf16.mxu0 0
        %2525 = vmatpush2.bf16.msra.mxu0 %v2488
        %2526 = vmatprep.subr.bf16.mxu0 0
        %2527 = vmatpush2.bf16.msra.mxu0 %v2487
        %2528 = vmatprep.subr.bf16.mxu0 0
        %2529 = vmatpush2.bf16.msra.mxu0 %v2486
        %2530 = vmatprep.subr.bf16.mxu0 0
        %2531 = vmatpush2.bf16.msra.mxu0 %v2485
        %2532 = vmatprep.subr.bf16.mxu0 0
        %2533 = vmatpush2.bf16.msra.mxu0 %v2484
        %2534 = vmatprep.subr.bf16.mxu0 0
        %2535 = vmatpush2.bf16.msra.mxu0 %v2483
        %2536 = vmatprep.subr.bf16.mxu0 0
        %2537 = vmatpush2.bf16.msra.mxu0 %v2482
        %2538 = vmatprep.mubr.bf16.mxu0 %v2370
        %2539 = vmatmul.mubr.bf16.gmra.mxu0 %v2369
        %v2540 = vpop.f32.mrf.mxu0
        %v2541 = vadd.f32 %v2408, %v2540
        %v2542 = vpop.f32.mrf.mxu0
        %v2543 = vpop.f32.mrf.mxu0
        %v2544 = vpop.f32.mrf.mxu0
        %2545 = vdwg.mxu0
        %v2546 = vadd.f32 %v2173, %v2541
        %2547 = vst [vmem:[%s538] sm:$0xff] %v2546
        %s2548 = sand.u32 %s319, 1
        %s2549 = scalar_lea.sflag [#allocation4], %s2548
        %s2550 = sand.u32 %s319, 1
        %s2551 = smul.addr %s2550, 8
        %s2552 = scalar_lea.vmem [#allocation14], %s2551
        // Predicated region
        $region101: #{tpu_custom_call.1} parent=71 // pred_check
          %p2553 = pneg %p329
        $region102: #{tpu_custom_call.1} parent=71 // pred_check_branch
          %2555 = sbr.rel (%p2553) target = $region104
        $region103: #{tpu_custom_call.1} parent=71 // pred_region
          %s2557 = ssub.s32 128, 128
          %2558 = vsyncadd %s2549, %s2557
          %s2559 = smul.addr %s33, 128
          %s2560 = scalar_lea.hbm %s13, %s2559
          %s2562 = sshll.u32 %s2552, 4
          %s2563 = int_to_ptr.vmem [resolvable:$true] %s2562
          %2565 = dma.vmem_to_hbm [thread:$0]  %s2563, 128, %s2560, %s2549
        $region104: #{tpu_custom_call.1} parent=71 // pred_fallthru
          _
      $region72: #{tpu_custom_call.1} parent=5 // pred_fallthru
        _
      %p2566 = scmp.le.s32.totalorder 2, %s28
      // Predicated region
      $region105: #{tpu_custom_call.1} parent=5 // pred_check
        %p2567 = pneg %p2566
      $region106: #{tpu_custom_call.1} parent=5 // pred_check_branch
        %2569 = sbr.rel (%p2567) target = $region108
      $region107: #{tpu_custom_call.1} parent=5 // pred_region
        %s2570 = ssub.s32 %s28, 2
        // Predicated region
        $region109: #{tpu_custom_call.1} parent=107 // pred_check
          %p2571 = pneg %p335
        $region110: #{tpu_custom_call.1} parent=107 // pred_check_branch
          %2573 = sbr.rel (%p2571) target = $region112
        $region111: #{tpu_custom_call.1} parent=107 // pred_region
          %s2574 = sand.u32 %s320, 1
          %s2575 = scalar_lea.sflag [#allocation4], %s2574
          %s2576 = sand.u32 %s320, 1
          %s2577 = smul.addr %s2576, 8
          %s2578 = scalar_lea.vmem [#allocation14], %s2577
          %2579 = dma.done %s2575, 128
        $region112: #{tpu_custom_call.1} parent=107 // pred_fallthru
          _
      $region108: #{tpu_custom_call.1} parent=5 // pred_fallthru
        _
    $region6: #{tpu_custom_call.1} parent=1 // loop_footer
      %s32 = sadd.s32 1, %s28
    $region7: #{tpu_custom_call.1} parent=1 // loop_footer_branch
      %27 = sbr.rel target = $region3
    $region8: #{tpu_custom_call.1} parent=1 // loop_exit
      _
    %2580 = vsyncpa [#allocation3], 1
    %s2581 = scalar_lea.sflag [#allocation3], 1
    %2582 = vsyncpa %s2581, 1
    %2583 = vsyncpa [#allocation6], 1
    %2584 = vsyncpa [#allocation9], 1
    %2585 = vsyncpa [#allocation12], 1
    %2586 = vsyncpa [#allocation4], 1
    %s2587 = scalar_lea.sflag [#allocation4], 1
    %2588 = vsyncpa %s2587, 1

</llo_original>
